<compile_context>
chip_gen: v6e
topology: v6e:2x2x1
jax: 0.10.0
libtpu: 0.0.40
codegen_flags: <defaults>
</compile_context>

<pallas_src>
import functools

import jax
import jax.numpy as jnp
from jax.experimental import pallas as pl
from jax.experimental.pallas import tpu as pltpu

# ----------------------------------------------------------------------------
# Model hyper-parameters (synthetic, small)
# ----------------------------------------------------------------------------
NUM_PARTS = 8        # num_parts
NUM_CHANNELS = 4     # num_channels
FILTER_SIZE = 3      # filter_size
NUM_UPDATES = 3      # num_updates
NUM_LAYERS = 1       # `num_layers` arg of forward (unused by this single layer)


def _round_up(x, m):
    return (x + m - 1) // m * m


# ----------------------------------------------------------------------------
# Pallas kernel: in-kernel conv (kh*kw shifted accumulating matmuls) + routing
# ----------------------------------------------------------------------------
def _bbn_kernel(w_ref, b_ref, x_ref, o_ref, *, tap_offsets, num_updates, m_out):
    # w_ref : (T, P, Cp)   per-tap conv weights (T = kh*kw, channels padded)
    # b_ref : (P, 1)       bias
    # x_ref : (Cp, L_in)   one image, channel-major, flattened padded spatial
    #                      axis on lanes, with `guard` zero lanes on each side
    # o_ref : (P, m_out)   conv+routing output for all padded spatial positions
    #
    # Conv: for each tap t the contribution to output lane m is
    #   W_t (P,Cp) @ x[:, m + off_t], i.e. a statically shifted lane window.
    acc = None
    for t, off in enumerate(tap_offsets):
        rhs = x_ref[:, off:off + m_out]                      # (Cp, m_out)
        part = jnp.dot(w_ref[t], rhs,
                       preferred_element_type=jnp.float32)   # MXU, (P, m_out)
        acc = part if acc is None else acc + part            # v7x: MRB accumulate
    conv = acc + b_ref[...]                                   # bias broadcast

    # Routing updates: softmax competition across parts (sublane axis 0).
    # Hoisted stabilisation constant: a_t = conv * p with p in [0,1], so
    # a_t <= max(conv, 0) elementwise; exp(a_t - m0) never overflows.
    m0 = jnp.maximum(jnp.max(conv, axis=0, keepdims=True), 0.0)
    a = conv
    for _ in range(num_updates):
        e = jnp.exp(a - m0)
        denom = jnp.sum(e, axis=0, keepdims=True)
        # Exact reciprocal: approx=True (EUP vrcp) error compounds through the
        # multiplicative routing iterations; keep exact.
        a = conv * (e * pl.reciprocal(denom, approx=False))

    o_ref[...] = a.astype(o_ref.dtype)


# ----------------------------------------------------------------------------
# Wrapper: Single_BBN.forward(img, num_layers, ...)  (jit'ed)
# ----------------------------------------------------------------------------
@functools.partial(jax.jit,
                   static_argnames=("num_layers", "record_local_corr", "eval"))
def single_bbn_forward(img_nchw, weight, bias, num_layers=NUM_LAYERS,
                       record_local_corr=True, eval=False):
    """img_nchw: (N, C, H, W) f32.  weight: (P, C, k, k).  bias: (P,)."""
    del num_layers, record_local_corr, eval  # TODO(synk): see header note

    N, C, H, W = img_nchw.shape
    P, _, kh, kw = weight.shape
    pad = kh // 2

    Hp, Wp = H + 2 * pad, W + 2 * pad
    Mp = Hp * Wp                                  # padded spatial positions
    guard = pad * Wp + pad                        # max |lane shift| per tap
    m_out = _round_up(Mp, 128)                    # lane-dense output width
    l_in = _round_up(m_out + 2 * guard, 128)      # guarded input lane width
    Cp = _round_up(C, 8)                          # sublane-aligned channels

    # One zero-pad of the raw image (no im2col, no 9x HBM amplification):
    # (N, C, H, W) -> (N, Cp, l_in) with the flattened padded spatial axis last.
    xp = jnp.pad(img_nchw, ((0, 0), (0, 0), (pad, pad), (pad, pad)))
    x_in = jnp.pad(xp.reshape(N, C, Mp),
                   ((0, 0), (0, Cp - C), (guard, l_in - guard - Mp)))

    # (P, C, kh, kw) -> (kh, kw, P, C) -> (T, P, Cp): per-tap weight matrices.
    w_taps = jnp.transpose(weight, (2, 3, 0, 1)).reshape(kh * kw, P, C)
    w_taps = jnp.pad(w_taps, ((0, 0), (0, 0), (0, Cp - C)))
    b_col = bias.reshape(P, 1).astype(jnp.float32)

    # Static lane offsets of each tap's shifted window (tap order = di*kw+dj).
    tap_offsets = tuple(guard + (di - pad) * Wp + (dj - pad)
                        for di in range(kh) for dj in range(kw))

    kernel = functools.partial(_bbn_kernel, tap_offsets=tap_offsets,
                               num_updates=NUM_UPDATES, m_out=m_out)

    out = pl.pallas_call(
        kernel,
        out_shape=jax.ShapeDtypeStruct((N, P, m_out), jnp.float32),
        grid_spec=pltpu.PrefetchScalarGridSpec(
            num_scalar_prefetch=0,
            grid=(N,),                                        # one image / step
            in_specs=[
                pl.BlockSpec((kh * kw, P, Cp), lambda n: (0, 0, 0)),  # resident
                pl.BlockSpec((P, 1), lambda n: (0, 0)),               # resident
                pl.BlockSpec((None, Cp, l_in), lambda n: (n, 0, 0)),  # per image
            ],
            out_specs=pl.BlockSpec((None, P, m_out), lambda n: (n, 0, 0)),
        ),
        compiler_params=pltpu.CompilerParams(
            # Grid steps are independent -> shard across v7x's 2 TensorCores;
            # near-zero cost on single-TC v5e/v6e.
            dimension_semantics=("parallel",),
        ),
    )(w_taps, b_col, x_in)                                    # (N, P, m_out)

    # Drop the lane padding and the 'same'-padding ring; already (N, P, H, W).
    out = out[:, :, :Mp].reshape(N, P, Hp, Wp)[:, :, pad:pad + H, pad:pad + W]
    return out


# ----------------------------------------------------------------------------
# Pure-JAX reference (silent correctness check)
# ----------------------------------------------------------------------------
def _reference(img_nchw, weight, bias):
    conv = jax.lax.conv_general_dilated(
        img_nchw, weight, window_strides=(1, 1), padding="SAME",
        dimension_numbers=("NCHW", "OIHW", "NCHW"),
    ) + bias.reshape(1, -1, 1, 1)
    a = conv
    for _ in range(NUM_UPDATES):
        p = jax.nn.softmax(a, axis=1)
        a = conv * p
    return a


# ----------------------------------------------------------------------------
# Main
# ----------------------------------------------------------------------------
if __name__ == "__main__":
    key = jax.random.PRNGKey(0)
    k_img, k_w, k_b = jax.random.split(key, 3)

    N, C, H, W = 2, NUM_CHANNELS, 16, 16
    img = jax.random.normal(k_img, (N, C, H, W), dtype=jnp.float32)

    # Deterministic parameter init (synthetic; no checkpoint loading).
    fan_in = C * FILTER_SIZE * FILTER_SIZE
    weight = jax.random.normal(
        k_w, (NUM_PARTS, C, FILTER_SIZE, FILTER_SIZE), dtype=jnp.float32
    ) * (1.0 / jnp.sqrt(fan_in))
    bias = 0.01 * jax.random.normal(k_b, (NUM_PARTS,), dtype=jnp.float32)

    out = single_bbn_forward(img, weight, bias, num_layers=NUM_LAYERS)
    out = jax.block_until_ready(out)

    ref = jax.block_until_ready(_reference(img, weight, bias))
    assert out.shape == (N, NUM_PARTS, H, W)
    assert jnp.max(jnp.abs(out - ref)) < 1e-3

    print("KERNEL_OK")
</pallas_src>

<mosaic_0001>
module attributes {stable_mosaic.version = 11 : i64} {
  func.func @_bbn_kernel(%arg0: i32, %arg1: memref<9x8x8xf32, #tpu.memory_space<vmem>>, %arg2: memref<8x1xf32, #tpu.memory_space<vmem>>, %arg3: memref<1x8x512xf32, #tpu.memory_space<vmem>>, %arg4: memref<1x8x384xf32, #tpu.memory_space<vmem>>) attributes {dimension_semantics = [#tpu.dimension_semantics<parallel>], iteration_bounds = array<i64: 2>, scalar_prefetch = 0 : i64, scratch_operands = 0 : i64, tpu.core_type = #tpu.core_type<tc>, window_params = [{pipeline_mode = #tpu.pipeline_mode<synchronous>, transform_indices = @transform_0, window_bounds = array<i64: 9, 8, 8>}, {pipeline_mode = #tpu.pipeline_mode<synchronous>, transform_indices = @transform_1, window_bounds = array<i64: 8, 1>}, {transform_indices = @transform_2, window_bounds = array<i64: 1, 8, 512>}, {transform_indices = @transform_3, window_bounds = array<i64: 1, 8, 384>}]} {
    %c0 = arith.constant 0 : index
    %c0_0 = arith.constant 0 : index
    %c0_1 = arith.constant 0 : index
    %0 = vector.load %arg3[%c0, %c0_0, %c0_1] : memref<1x8x512xf32, #tpu.memory_space<vmem>>, vector<1x8x384xf32>
    %1 = vector.shape_cast %0 : vector<1x8x384xf32> to vector<8x384xf32>
    %c0_2 = arith.constant 0 : index
    %c0_3 = arith.constant 0 : index
    %c0_4 = arith.constant 0 : index
    %2 = vector.load %arg1[%c0_2, %c0_3, %c0_4] : memref<9x8x8xf32, #tpu.memory_space<vmem>>, vector<1x8x8xf32>
    %3 = vector.shape_cast %2 : vector<1x8x8xf32> to vector<8x8xf32>
    %cst = arith.constant dense<0.000000e+00> : vector<8x384xf32>
    %4 = tpu.matmul %3, %1, %cst {dimension_numbers = #tpu.dot_dimension_numbers<[1], [0], [0], [1], [0, 0, 1, 1], [], []>} : vector<8x8xf32>, vector<8x384xf32>, vector<8x384xf32> -> vector<8x384xf32>
    %c0_5 = arith.constant 0 : index
    %c0_6 = arith.constant 0 : index
    %c1 = arith.constant 1 : index
    %5 = vector.load %arg3[%c0_5, %c0_6, %c1] : memref<1x8x512xf32, #tpu.memory_space<vmem>>, vector<1x8x384xf32>
    %6 = vector.shape_cast %5 : vector<1x8x384xf32> to vector<8x384xf32>
    %c1_7 = arith.constant 1 : index
    %c0_8 = arith.constant 0 : index
    %c0_9 = arith.constant 0 : index
    %7 = vector.load %arg1[%c1_7, %c0_8, %c0_9] : memref<9x8x8xf32, #tpu.memory_space<vmem>>, vector<1x8x8xf32>
    %8 = vector.shape_cast %7 : vector<1x8x8xf32> to vector<8x8xf32>
    %cst_10 = arith.constant dense<0.000000e+00> : vector<8x384xf32>
    %9 = tpu.matmul %8, %6, %cst_10 {dimension_numbers = #tpu.dot_dimension_numbers<[1], [0], [0], [1], [0, 0, 1, 1], [], []>} : vector<8x8xf32>, vector<8x384xf32>, vector<8x384xf32> -> vector<8x384xf32>
    %10 = arith.addf %4, %9 : vector<8x384xf32>
    %c0_11 = arith.constant 0 : index
    %c0_12 = arith.constant 0 : index
    %c2 = arith.constant 2 : index
    %11 = vector.load %arg3[%c0_11, %c0_12, %c2] : memref<1x8x512xf32, #tpu.memory_space<vmem>>, vector<1x8x384xf32>
    %12 = vector.shape_cast %11 : vector<1x8x384xf32> to vector<8x384xf32>
    %c2_13 = arith.constant 2 : index
    %c0_14 = arith.constant 0 : index
    %c0_15 = arith.constant 0 : index
    %13 = vector.load %arg1[%c2_13, %c0_14, %c0_15] : memref<9x8x8xf32, #tpu.memory_space<vmem>>, vector<1x8x8xf32>
    %14 = vector.shape_cast %13 : vector<1x8x8xf32> to vector<8x8xf32>
    %cst_16 = arith.constant dense<0.000000e+00> : vector<8x384xf32>
    %15 = tpu.matmul %14, %12, %cst_16 {dimension_numbers = #tpu.dot_dimension_numbers<[1], [0], [0], [1], [0, 0, 1, 1], [], []>} : vector<8x8xf32>, vector<8x384xf32>, vector<8x384xf32> -> vector<8x384xf32>
    %16 = arith.addf %10, %15 : vector<8x384xf32>
    %c0_17 = arith.constant 0 : index
    %c0_18 = arith.constant 0 : index
    %c18 = arith.constant 18 : index
    %17 = vector.load %arg3[%c0_17, %c0_18, %c18] : memref<1x8x512xf32, #tpu.memory_space<vmem>>, vector<1x8x384xf32>
    %18 = vector.shape_cast %17 : vector<1x8x384xf32> to vector<8x384xf32>
    %c3 = arith.constant 3 : index
    %c0_19 = arith.constant 0 : index
    %c0_20 = arith.constant 0 : index
    %19 = vector.load %arg1[%c3, %c0_19, %c0_20] : memref<9x8x8xf32, #tpu.memory_space<vmem>>, vector<1x8x8xf32>
    %20 = vector.shape_cast %19 : vector<1x8x8xf32> to vector<8x8xf32>
    %cst_21 = arith.constant dense<0.000000e+00> : vector<8x384xf32>
    %21 = tpu.matmul %20, %18, %cst_21 {dimension_numbers = #tpu.dot_dimension_numbers<[1], [0], [0], [1], [0, 0, 1, 1], [], []>} : vector<8x8xf32>, vector<8x384xf32>, vector<8x384xf32> -> vector<8x384xf32>
    %22 = arith.addf %16, %21 : vector<8x384xf32>
    %c0_22 = arith.constant 0 : index
    %c0_23 = arith.constant 0 : index
    %c19 = arith.constant 19 : index
    %23 = vector.load %arg3[%c0_22, %c0_23, %c19] : memref<1x8x512xf32, #tpu.memory_space<vmem>>, vector<1x8x384xf32>
    %24 = vector.shape_cast %23 : vector<1x8x384xf32> to vector<8x384xf32>
    %c4 = arith.constant 4 : index
    %c0_24 = arith.constant 0 : index
    %c0_25 = arith.constant 0 : index
    %25 = vector.load %arg1[%c4, %c0_24, %c0_25] : memref<9x8x8xf32, #tpu.memory_space<vmem>>, vector<1x8x8xf32>
    %26 = vector.shape_cast %25 : vector<1x8x8xf32> to vector<8x8xf32>
    %cst_26 = arith.constant dense<0.000000e+00> : vector<8x384xf32>
    %27 = tpu.matmul %26, %24, %cst_26 {dimension_numbers = #tpu.dot_dimension_numbers<[1], [0], [0], [1], [0, 0, 1, 1], [], []>} : vector<8x8xf32>, vector<8x384xf32>, vector<8x384xf32> -> vector<8x384xf32>
    %28 = arith.addf %22, %27 : vector<8x384xf32>
    %c0_27 = arith.constant 0 : index
    %c0_28 = arith.constant 0 : index
    %c20 = arith.constant 20 : index
    %29 = vector.load %arg3[%c0_27, %c0_28, %c20] : memref<1x8x512xf32, #tpu.memory_space<vmem>>, vector<1x8x384xf32>
    %30 = vector.shape_cast %29 : vector<1x8x384xf32> to vector<8x384xf32>
    %c5 = arith.constant 5 : index
    %c0_29 = arith.constant 0 : index
    %c0_30 = arith.constant 0 : index
    %31 = vector.load %arg1[%c5, %c0_29, %c0_30] : memref<9x8x8xf32, #tpu.memory_space<vmem>>, vector<1x8x8xf32>
    %32 = vector.shape_cast %31 : vector<1x8x8xf32> to vector<8x8xf32>
    %cst_31 = arith.constant dense<0.000000e+00> : vector<8x384xf32>
    %33 = tpu.matmul %32, %30, %cst_31 {dimension_numbers = #tpu.dot_dimension_numbers<[1], [0], [0], [1], [0, 0, 1, 1], [], []>} : vector<8x8xf32>, vector<8x384xf32>, vector<8x384xf32> -> vector<8x384xf32>
    %34 = arith.addf %28, %33 : vector<8x384xf32>
    %c0_32 = arith.constant 0 : index
    %c0_33 = arith.constant 0 : index
    %c36 = arith.constant 36 : index
    %35 = vector.load %arg3[%c0_32, %c0_33, %c36] : memref<1x8x512xf32, #tpu.memory_space<vmem>>, vector<1x8x384xf32>
    %36 = vector.shape_cast %35 : vector<1x8x384xf32> to vector<8x384xf32>
    %c6 = arith.constant 6 : index
    %c0_34 = arith.constant 0 : index
    %c0_35 = arith.constant 0 : index
    %37 = vector.load %arg1[%c6, %c0_34, %c0_35] : memref<9x8x8xf32, #tpu.memory_space<vmem>>, vector<1x8x8xf32>
    %38 = vector.shape_cast %37 : vector<1x8x8xf32> to vector<8x8xf32>
    %cst_36 = arith.constant dense<0.000000e+00> : vector<8x384xf32>
    %39 = tpu.matmul %38, %36, %cst_36 {dimension_numbers = #tpu.dot_dimension_numbers<[1], [0], [0], [1], [0, 0, 1, 1], [], []>} : vector<8x8xf32>, vector<8x384xf32>, vector<8x384xf32> -> vector<8x384xf32>
    %40 = arith.addf %34, %39 : vector<8x384xf32>
    %c0_37 = arith.constant 0 : index
    %c0_38 = arith.constant 0 : index
    %c37 = arith.constant 37 : index
    %41 = vector.load %arg3[%c0_37, %c0_38, %c37] : memref<1x8x512xf32, #tpu.memory_space<vmem>>, vector<1x8x384xf32>
    %42 = vector.shape_cast %41 : vector<1x8x384xf32> to vector<8x384xf32>
    %c7 = arith.constant 7 : index
    %c0_39 = arith.constant 0 : index
    %c0_40 = arith.constant 0 : index
    %43 = vector.load %arg1[%c7, %c0_39, %c0_40] : memref<9x8x8xf32, #tpu.memory_space<vmem>>, vector<1x8x8xf32>
    %44 = vector.shape_cast %43 : vector<1x8x8xf32> to vector<8x8xf32>
    %cst_41 = arith.constant dense<0.000000e+00> : vector<8x384xf32>
    %45 = tpu.matmul %44, %42, %cst_41 {dimension_numbers = #tpu.dot_dimension_numbers<[1], [0], [0], [1], [0, 0, 1, 1], [], []>} : vector<8x8xf32>, vector<8x384xf32>, vector<8x384xf32> -> vector<8x384xf32>
    %46 = arith.addf %40, %45 : vector<8x384xf32>
    %c0_42 = arith.constant 0 : index
    %c0_43 = arith.constant 0 : index
    %c38 = arith.constant 38 : index
    %47 = vector.load %arg3[%c0_42, %c0_43, %c38] : memref<1x8x512xf32, #tpu.memory_space<vmem>>, vector<1x8x384xf32>
    %48 = vector.shape_cast %47 : vector<1x8x384xf32> to vector<8x384xf32>
    %c8 = arith.constant 8 : index
    %c0_44 = arith.constant 0 : index
    %c0_45 = arith.constant 0 : index
    %49 = vector.load %arg1[%c8, %c0_44, %c0_45] : memref<9x8x8xf32, #tpu.memory_space<vmem>>, vector<1x8x8xf32>
    %50 = vector.shape_cast %49 : vector<1x8x8xf32> to vector<8x8xf32>
    %cst_46 = arith.constant dense<0.000000e+00> : vector<8x384xf32>
    %51 = tpu.matmul %50, %48, %cst_46 {dimension_numbers = #tpu.dot_dimension_numbers<[1], [0], [0], [1], [0, 0, 1, 1], [], []>} : vector<8x8xf32>, vector<8x384xf32>, vector<8x384xf32> -> vector<8x384xf32>
    %52 = arith.addf %46, %51 : vector<8x384xf32>
    %c0_47 = arith.constant 0 : index
    %c0_48 = arith.constant 0 : index
    %53 = vector.load %arg2[%c0_47, %c0_48] : memref<8x1xf32, #tpu.memory_space<vmem>>, vector<8x1xf32>
    %54 = vector.broadcast %53 : vector<8x1xf32> to vector<8x384xf32>
    %55 = arith.addf %52, %54 : vector<8x384xf32>
    %cst_49 = arith.constant dense<0xFF800000> : vector<384xf32>
    %56 = vector.multi_reduction <maximumf>, %55, %cst_49 [0] : vector<8x384xf32> to vector<384xf32>
    %57 = vector.shape_cast %56 : vector<384xf32> to vector<1x384xf32>
    %cst_50 = arith.constant 0.000000e+00 : f32
    %58 = vector.broadcast %cst_50 : f32 to vector<1x384xf32>
    %59 = arith.maximumf %57, %58 : vector<1x384xf32>
    %60 = vector.broadcast %59 : vector<1x384xf32> to vector<8x384xf32>
    %61 = arith.subf %55, %60 : vector<8x384xf32>
    %62 = math.exp %61 : vector<8x384xf32>
    %cst_51 = arith.constant dense<0.000000e+00> : vector<384xf32>
    %63 = vector.multi_reduction <add>, %62, %cst_51 [0] : vector<8x384xf32> to vector<384xf32>
    %64 = vector.shape_cast %63 : vector<384xf32> to vector<1x384xf32>
    %65 = tpu.reciprocal %64 : vector<1x384xf32> -> vector<1x384xf32>
    %66 = vector.broadcast %65 : vector<1x384xf32> to vector<8x384xf32>
    %67 = arith.mulf %62, %66 : vector<8x384xf32>
    %68 = arith.mulf %55, %67 : vector<8x384xf32>
    %69 = vector.broadcast %59 : vector<1x384xf32> to vector<8x384xf32>
    %70 = arith.subf %68, %69 : vector<8x384xf32>
    %71 = math.exp %70 : vector<8x384xf32>
    %cst_52 = arith.constant dense<0.000000e+00> : vector<384xf32>
    %72 = vector.multi_reduction <add>, %71, %cst_52 [0] : vector<8x384xf32> to vector<384xf32>
    %73 = vector.shape_cast %72 : vector<384xf32> to vector<1x384xf32>
    %74 = tpu.reciprocal %73 : vector<1x384xf32> -> vector<1x384xf32>
    %75 = vector.broadcast %74 : vector<1x384xf32> to vector<8x384xf32>
    %76 = arith.mulf %71, %75 : vector<8x384xf32>
    %77 = arith.mulf %55, %76 : vector<8x384xf32>
    %78 = vector.broadcast %59 : vector<1x384xf32> to vector<8x384xf32>
    %79 = arith.subf %77, %78 : vector<8x384xf32>
    %80 = math.exp %79 : vector<8x384xf32>
    %cst_53 = arith.constant dense<0.000000e+00> : vector<384xf32>
    %81 = vector.multi_reduction <add>, %80, %cst_53 [0] : vector<8x384xf32> to vector<384xf32>
    %82 = vector.shape_cast %81 : vector<384xf32> to vector<1x384xf32>
    %83 = tpu.reciprocal %82 : vector<1x384xf32> -> vector<1x384xf32>
    %84 = vector.broadcast %83 : vector<1x384xf32> to vector<8x384xf32>
    %85 = arith.mulf %80, %84 : vector<8x384xf32>
    %86 = arith.mulf %55, %85 : vector<8x384xf32>
    %c0_54 = arith.constant 0 : index
    %c0_55 = arith.constant 0 : index
    %c0_56 = arith.constant 0 : index
    %87 = vector.load %arg4[%c0_54, %c0_55, %c0_56] : memref<1x8x384xf32, #tpu.memory_space<vmem>>, vector<1x8x384xf32>
    %88 = vector.shape_cast %87 : vector<1x8x384xf32> to vector<8x384xf32>
    %89 = vector.shape_cast %86 : vector<8x384xf32> to vector<1x8x384xf32>
    tpu.vector_store %arg4[%c0_54, %c0_55, %c0_56], %89 {strides = array<i32>} : memref<1x8x384xf32, #tpu.memory_space<vmem>>, vector<1x8x384xf32>,
    return
  }
  func.func @transform_0(%arg0: i32) -> (i32, i32, i32) {
    %c0_i32 = arith.constant 0 : i32
    %c0_i32_0 = arith.constant 0 : i32
    %c0_i32_1 = arith.constant 0 : i32
    %c0_i32_2 = arith.constant 0 : i32
    return %c0_i32, %c0_i32_0, %c0_i32_1 : i32, i32, i32
  }
  func.func @transform_1(%arg0: i32) -> (i32, i32) {
    %c0_i32 = arith.constant 0 : i32
    %c0_i32_0 = arith.constant 0 : i32
    %c0_i32_1 = arith.constant 0 : i32
    return %c0_i32, %c0_i32_0 : i32, i32
  }
  func.func @transform_2(%arg0: i32) -> (i32, i32, i32) {
    %c0_i32 = arith.constant 0 : i32
    %c0_i32_0 = arith.constant 0 : i32
    %c0_i32_1 = arith.constant 0 : i32
    return %arg0, %c0_i32, %c0_i32_0 : i32, i32, i32
  }
  func.func @transform_3(%arg0: i32) -> (i32, i32, i32) {
    %c0_i32 = arith.constant 0 : i32
    %c0_i32_0 = arith.constant 0 : i32
    %c0_i32_1 = arith.constant 0 : i32
    return %arg0, %c0_i32, %c0_i32_0 : i32, i32, i32
  }
}

</mosaic_0001>

<llo_original>
// kernel: single_bbn_forward.1
$region0: #{single_bbn_forward.1}
  #allocation0 [shape = 'u32[]', space=smem, size = 0x4, offset = 0x4, fixed_abs, tag = 'smem constant byte address 0x4 - core index']
  #allocation1 [shape = 'u32[144,128]{1,0:T(1,128)}', space=vmem, size = 0x12000, scoped, tag = 'internal scratch']
  %s0 = inlined_call_operand.vmem [shape: f32[9,8,8], index: 0, kind: input, shape index: {}]
  %s1 = inlined_call_operand.vmem [shape: f32[8,1], index: 1, kind: input, shape index: {}]
  %s2 = inlined_call_operand.vmem [shape: f32[2,8,512], index: 2, kind: input, shape index: {}]
  %s3 = inlined_call_operand.vmem [shape: f32[2,8,384], index: 3, kind: output, shape index: {}]
  %s4 = sld [smem:[#allocation0]]
  $region45: #{single_bbn_forward.1} parent=0
    _
  %s6 = ssub.s32 1, %s4
  %s7 = scalar_select 0, %s6, %s4
  loop: start=0, step=1, limit=4
  $region2: #{single_bbn_forward.1} parent=0 // loop_pre_header
    _
  $region3: #{single_bbn_forward.1} parent=0 // loop_header
    %s9 = sphi 0, %s13
    %p10 = scmp.ge.s32.totalorder %s9, 4
    %s17 = sphi 0, %s17
    %s19 = sphi 0, %s17
    %s20 = sphi 0, %s19
    %s34 = sphi 0, %s20
    %s38 = sphi 0, %s38
    %s40 = sphi 0, %s38
    %s41 = sphi 0, %s40
    %s55 = sphi 0, %s41
    %s61 = sphi 0, %s63
    %s64 = sphi 0, %s61
    %s65 = sphi 0, %s64
    %s81 = sphi 0, %s65
    %s87 = sphi 0, %s89
    %s90 = sphi 0, %s87
    %s91 = sphi 0, %s90
    %s107 = sphi 0, %s91
  $region4: #{single_bbn_forward.1} parent=0 // loop_header_branch
    %12 = sbr.rel (%p10) target = $region8
  $region5: #{single_bbn_forward.1} parent=0 // loop_body
    %s14 = ssub.s32 %s9, 1
    %s15 = ssub.s32 %s9, 2
    %s16 = sadd.s32 %s9, 1
    %s18 = sadd.s32 %s17, 1
    %p21 = scmp.eq.s32.totalorder %s9, 1
    %p22 = scmp.ne.s32.totalorder %s17, %s19
    %p23 = scmp.eq.s32.totalorder %s9, 0
    %p24 = por %p22, %p23
    %p25 = scmp.ne.s32.totalorder %s17, %s19
    %p26 = scmp.eq.s32.totalorder %s14, 1
    %p27 = por %p25, %p26
    %p28 = scmp.ne.s32.totalorder %s19, %s20
    %p29 = scmp.eq.s32.totalorder %s14, 0
    %p30 = por %p28, %p29
    %p31 = scmp.ne.s32.totalorder %s19, %s20
    %p32 = scmp.eq.s32.totalorder %s15, 1
    %p33 = por %p31, %p32
    %p35 = scmp.ne.s32.totalorder %s20, %s34
    %p36 = scmp.eq.s32.totalorder %s15, 0
    %p37 = por %p35, %p36
    %s39 = sadd.s32 %s38, 1
    %p42 = scmp.eq.s32.totalorder %s9, 1
    %p43 = scmp.ne.s32.totalorder %s38, %s40
    %p44 = scmp.eq.s32.totalorder %s9, 0
    %p45 = por %p43, %p44
    %p46 = scmp.ne.s32.totalorder %s38, %s40
    %p47 = scmp.eq.s32.totalorder %s14, 1
    %p48 = por %p46, %p47
    %p49 = scmp.ne.s32.totalorder %s40, %s41
    %p50 = scmp.eq.s32.totalorder %s14, 0
    %p51 = por %p49, %p50
    %p52 = scmp.ne.s32.totalorder %s40, %s41
    %p53 = scmp.eq.s32.totalorder %s15, 1
    %p54 = por %p52, %p53
    %p56 = scmp.ne.s32.totalorder %s41, %s55
    %p57 = scmp.eq.s32.totalorder %s15, 0
    %p58 = por %p56, %p57
    %s59 = ssub.s32 %s9, %s16
    %p60 = scmp.eq.s32.totalorder %s59, 0
    %s62 = sadd.s32 %s61, 1
    %s63 = scalar_select %p60, %s61, %s62
    %p66 = pneg %p60
    %p67 = scmp.eq.s32.totalorder %s9, 1
    %p68 = por %p66, %p67
    %p69 = scmp.ne.s32.totalorder %s61, %s64
    %p70 = scmp.eq.s32.totalorder %s9, 0
    %p71 = por %p69, %p70
    %p72 = scmp.ne.s32.totalorder %s61, %s64
    %p73 = scmp.eq.s32.totalorder %s14, 1
    %p74 = por %p72, %p73
    %p75 = scmp.ne.s32.totalorder %s64, %s65
    %p76 = scmp.eq.s32.totalorder %s14, 0
    %p77 = por %p75, %p76
    %p78 = scmp.ne.s32.totalorder %s64, %s65
    %p79 = scmp.eq.s32.totalorder %s15, 1
    %p80 = por %p78, %p79
    %p82 = scmp.ne.s32.totalorder %s65, %s81
    %p83 = scmp.eq.s32.totalorder %s15, 0
    %p84 = por %p82, %p83
    %s85 = ssub.s32 %s9, %s16
    %p86 = scmp.eq.s32.totalorder %s85, 0
    %s88 = sadd.s32 %s87, 1
    %s89 = scalar_select %p86, %s87, %s88
    %p92 = pneg %p86
    %p93 = scmp.eq.s32.totalorder %s9, 1
    %p94 = por %p92, %p93
    %p95 = scmp.ne.s32.totalorder %s87, %s90
    %p96 = scmp.eq.s32.totalorder %s9, 0
    %p97 = por %p95, %p96
    %p98 = scmp.ne.s32.totalorder %s87, %s90
    %p99 = scmp.eq.s32.totalorder %s14, 1
    %p100 = por %p98, %p99
    %p101 = scmp.ne.s32.totalorder %s90, %s91
    %p102 = scmp.eq.s32.totalorder %s14, 0
    %p103 = por %p101, %p102
    %p104 = scmp.ne.s32.totalorder %s90, %s91
    %p105 = scmp.eq.s32.totalorder %s15, 1
    %p106 = por %p104, %p105
    %p108 = scmp.ne.s32.totalorder %s91, %s107
    %p109 = scmp.eq.s32.totalorder %s15, 0
    %p110 = por %p108, %p109
    %p111 = scmp.le.s32.totalorder 1, %s9
    %p112 = scmp.lt.s32.totalorder %s9, 3
    %p113 = pnand %p111, %p112
    %p114 = pneg %p113
    // Predicated region
    $region9: #{single_bbn_forward.1} parent=5 // pred_check
      _
    $region10: #{single_bbn_forward.1} parent=5 // pred_check_branch
      %116 = sbr.rel (%p113) target = $region12
    $region11: #{single_bbn_forward.1} parent=5 // pred_region
      %s117 = ssub.s32 %s9, 1
      // Predicated region
      $region13: #{single_bbn_forward.1} parent=11 // pred_check
        %p118 = pneg %p30
      $region14: #{single_bbn_forward.1} parent=11 // pred_check_branch
        %120 = sbr.rel (%p118) target = $region16
      $region15: #{single_bbn_forward.1} parent=11 // pred_region
        _
      $region16: #{single_bbn_forward.1} parent=11 // pred_fallthru
        _
      // Predicated region
      $region17: #{single_bbn_forward.1} parent=11 // pred_check
        %p121 = pneg %p51
      $region18: #{single_bbn_forward.1} parent=11 // pred_check_branch
        %123 = sbr.rel (%p121) target = $region20
      $region19: #{single_bbn_forward.1} parent=11 // pred_region
        _
      $region20: #{single_bbn_forward.1} parent=11 // pred_fallthru
        _
    $region12: #{single_bbn_forward.1} parent=5 // pred_fallthru
      _
    %p124 = scmp.lt.s32.totalorder %s9, 2
    // Predicated region
    $region21: #{single_bbn_forward.1} parent=5 // pred_check
      %p125 = pneg %p124
    $region22: #{single_bbn_forward.1} parent=5 // pred_check_branch
      %127 = sbr.rel (%p125) target = $region24
    $region23: #{single_bbn_forward.1} parent=5 // pred_region
      // Predicated region
      $region25: #{single_bbn_forward.1} parent=23 // pred_check
        %p128 = pneg %p71
      $region26: #{single_bbn_forward.1} parent=23 // pred_check_branch
        %130 = sbr.rel (%p128) target = $region28
      $region27: #{single_bbn_forward.1} parent=23 // pred_region
        %p131 = scmp.lt.s32.totalorder %s9, 1
        %s132 = scalar_select %p131, %s9, 1
        %s133 = smul.addr %s132, 4
        %s134 = smul.addr %s133, 8
        %s135 = scalar_lea.vmem %s2, %s134
      $region28: #{single_bbn_forward.1} parent=23 // pred_fallthru
        _
    $region24: #{single_bbn_forward.1} parent=5 // pred_fallthru
      _
    %p136 = scmp.le.s32.totalorder 1, %s9
    %p137 = scmp.lt.s32.totalorder %s9, 3
    %p138 = pnand %p136, %p137
    %p139 = pneg %p138
    // Predicated region
    $region29: #{single_bbn_forward.1} parent=5 // pred_check
      _
    $region30: #{single_bbn_forward.1} parent=5 // pred_check_branch
      %141 = sbr.rel (%p138) target = $region32
    $region31: #{single_bbn_forward.1} parent=5 // pred_region
      %s142 = ssub.s32 %s9, 1
      %p143 = pneg %p30
      %p144 = pneg %p27
      %p145 = pneg %p51
      %p146 = pneg %p48
      %p147 = scmp.lt.s32.totalorder %s14, 1
      %s148 = scalar_select %p147, %s14, 1
      %s149 = smul.addr %s148, 4
      %s150 = smul.addr %s149, 8
      %s151 = scalar_lea.vmem %s2, %s150
      %p152 = pneg %p77
      %p153 = pneg %p74
      %p154 = pneg %p103
      %p155 = pneg %p100
      %p156 = scmp.lt.s32.totalorder %s14, 1
      %s157 = scalar_select %p156, %s14, 1
      %s158 = smul.addr %s157, 3
      %s159 = smul.addr %s158, 8
      %s160 = scalar_lea.vmem %s3, %s159
      %p161 = scmp.lt.s32.totalorder %s14, 1
      %s162 = scalar_select %p161, %s14, 1
      %s163 = smul.addr %s162, 4
      %s164 = smul.addr %s163, 8
      %s165 = scalar_lea.vmem %s2, %s164
      %p166 = scmp.lt.s32.totalorder %s14, 1
      %s167 = scalar_select %p166, %s14, 1
      %s168 = smul.addr %s167, 3
      %s169 = smul.addr %s168, 8
      %s170 = scalar_lea.vmem %s3, %s169
      %v171 = vld [vmem:[%s165] sm:$0xff]
      %v172 = vld [vmem:[%s165 + $0x8] sm:$0xff]
      %v173 = vld [vmem:[%s165 + $0x10] sm:$0xff]
      %v174 = vld [vmem:[%s0] sm:$0xff]
      %v175 = vld [vmem:[%s165] sm:$0xff]
      %v176 = vld [vmem:[%s165 + $0x8] sm:$0xff]
      %v177 = vld [vmem:[%s165 + $0x10] sm:$0xff]
      %v178 = vld [vmem:[%s165 + $0x18] sm:$0xff]
      %s179 = scalar_lea.vmem %s0, 8
      %v180 = vld [vmem:[%s179] sm:$0xff]
      %185 = vrot.lane.b32.xlu0 %v175, 127
      %v186 = vpop.permute.xlu0 %185
      %187 = vrot.lane.b32.xlu0 %v176, 127
      %v188 = vpop.permute.xlu0 %187
      %189 = vrot.lane.b32.xlu0 %v177, 127
      %v190 = vpop.permute.xlu0 %189
      %191 = vrot.lane.b32.xlu0 %v178, 127
      %v192 = vpop.permute.xlu0 %191
      %vm193 = vcmask 1039360
      %v194 = vsel %vm193, %v186, %v188
      %v195 = vsel %vm193, %v188, %v190
      %v196 = vsel %vm193, %v190, %v192
      %vm200 = vcmask 64512
      %v202 = vsel %vm200, %v180, 0
      %204 = vmatprep.subr.mxu0 0.0
      %205 = vmatpush1.msra.mxu0 0.0
      %206 = vmatprep.subr.mxu0 0.0
      %207 = vmatpush1.msra.mxu0 0.0
      %208 = vmatprep.subr.mxu0 0.0
      %209 = vmatpush1.msra.mxu0 0.0
      %210 = vmatprep.subr.mxu0 0.0
      %211 = vmatpush1.msra.mxu0 0.0
      %212 = vmatprep.subr.mxu0 0.0
      %213 = vmatpush1.msra.mxu0 0.0
      %214 = vmatprep.subr.mxu0 0.0
      %215 = vmatpush1.msra.mxu0 0.0
      %216 = vmatprep.subr.mxu0 0.0
      %217 = vmatpush1.msra.mxu0 0.0
      %218 = vmatprep.subr.mxu0 0.0
      %219 = vmatpush1.msra.mxu0 0.0
      %220 = vmatprep.subr.mxu0 0.0
      %221 = vmatpush1.msra.mxu0 0.0
      %222 = vmatprep.subr.mxu0 0.0
      %223 = vmatpush1.msra.mxu0 0.0
      %224 = vmatprep.subr.mxu0 0.0
      %225 = vmatpush1.msra.mxu0 0.0
      %226 = vmatprep.subr.mxu0 0.0
      %227 = vmatpush1.msra.mxu0 0.0
      %228 = vmatprep.subr.mxu0 0.0
      %229 = vmatpush1.msra.mxu0 0.0
      %230 = vmatprep.subr.mxu0 0.0
      %231 = vmatpush1.msra.mxu0 0.0
      %232 = vmatprep.subr.mxu0 0.0
      %233 = vmatpush1.msra.mxu0 0.0
      %234 = vmatprep.subr.mxu0 %v195
      %235 = vmatpush1.msra.mxu0 %v194
      %236 = vmatprep.subr.mxu0 0.0
      %237 = vmatpush2.msra.mxu0 0.0
      %238 = vmatprep.subr.mxu0 0.0
      %239 = vmatpush2.msra.mxu0 0.0
      %240 = vmatprep.subr.mxu0 0.0
      %241 = vmatpush2.msra.mxu0 0.0
      %242 = vmatprep.subr.mxu0 0.0
      %243 = vmatpush2.msra.mxu0 0.0
      %244 = vmatprep.subr.mxu0 0.0
      %245 = vmatpush2.msra.mxu0 0.0
      %246 = vmatprep.subr.mxu0 0.0
      %247 = vmatpush2.msra.mxu0 0.0
      %248 = vmatprep.subr.mxu0 0.0
      %249 = vmatpush2.msra.mxu0 0.0
      %250 = vmatprep.subr.mxu0 0.0
      %251 = vmatpush2.msra.mxu0 0.0
      %252 = vmatprep.subr.mxu0 0.0
      %253 = vmatpush2.msra.mxu0 0.0
      %254 = vmatprep.subr.mxu0 0.0
      %255 = vmatpush2.msra.mxu0 0.0
      %256 = vmatprep.subr.mxu0 0.0
      %257 = vmatpush2.msra.mxu0 0.0
      %258 = vmatprep.subr.mxu0 0.0
      %259 = vmatpush2.msra.mxu0 0.0
      %260 = vmatprep.subr.mxu0 0.0
      %261 = vmatpush2.msra.mxu0 0.0
      %262 = vmatprep.subr.mxu0 0.0
      %263 = vmatpush2.msra.mxu0 0.0
      %264 = vmatprep.subr.mxu0 0.0
      %265 = vmatpush2.msra.mxu0 0.0
      %266 = vmatprep.subr.mxu0 0.0
      %267 = vmatpush2.msra.mxu0 0.0
      %268 = vmatprep.mubr.f32.mxu0 0.0
      %269 = vmatmul.mubr.f32.gmra.mxu0 %v202
      %v270 = vpop.f32.mrf.mxu0
      %v271 = vadd.f32 0.0, %v270
      %v272 = vpop.f32.mrf.mxu0
      %v273 = vadd.f32 0.0, %v272
      %274 = vdwg.mxu0
      %275 = vmatprep.subr.mxu0 0.0
      %276 = vmatpush1.msra.mxu0 0.0
      %277 = vmatprep.subr.mxu0 0.0
      %278 = vmatpush1.msra.mxu0 0.0
      %279 = vmatprep.subr.mxu0 0.0
      %280 = vmatpush1.msra.mxu0 0.0
      %281 = vmatprep.subr.mxu0 0.0
      %282 = vmatpush1.msra.mxu0 0.0
      %283 = vmatprep.subr.mxu0 0.0
      %284 = vmatpush1.msra.mxu0 0.0
      %285 = vmatprep.subr.mxu0 0.0
      %286 = vmatpush1.msra.mxu0 0.0
      %287 = vmatprep.subr.mxu0 0.0
      %288 = vmatpush1.msra.mxu0 0.0
      %289 = vmatprep.subr.mxu0 0.0
      %290 = vmatpush1.msra.mxu0 0.0
      %291 = vmatprep.subr.mxu0 0.0
      %292 = vmatpush1.msra.mxu0 0.0
      %293 = vmatprep.subr.mxu0 0.0
      %294 = vmatpush1.msra.mxu0 0.0
      %295 = vmatprep.subr.mxu0 0.0
      %296 = vmatpush1.msra.mxu0 0.0
      %297 = vmatprep.subr.mxu0 0.0
      %298 = vmatpush1.msra.mxu0 0.0
      %299 = vmatprep.subr.mxu0 0.0
      %300 = vmatpush1.msra.mxu0 0.0
      %301 = vmatprep.subr.mxu0 0.0
      %302 = vmatpush1.msra.mxu0 0.0
      %303 = vmatprep.subr.mxu0 0.0
      %304 = vmatpush1.msra.mxu0 0.0
      %305 = vmatprep.subr.mxu0 0.0
      %306 = vmatpush1.msra.mxu0 %v196
      %307 = vmatprep.subr.mxu0 0.0
      %308 = vmatpush2.msra.mxu0 0.0
      %309 = vmatprep.subr.mxu0 0.0
      %310 = vmatpush2.msra.mxu0 0.0
      %311 = vmatprep.subr.mxu0 0.0
      %312 = vmatpush2.msra.mxu0 0.0
      %313 = vmatprep.subr.mxu0 0.0
      %314 = vmatpush2.msra.mxu0 0.0
      %315 = vmatprep.subr.mxu0 0.0
      %316 = vmatpush2.msra.mxu0 0.0
      %317 = vmatprep.subr.mxu0 0.0
      %318 = vmatpush2.msra.mxu0 0.0
      %319 = vmatprep.subr.mxu0 0.0
      %320 = vmatpush2.msra.mxu0 0.0
      %321 = vmatprep.subr.mxu0 0.0
      %322 = vmatpush2.msra.mxu0 0.0
      %323 = vmatprep.subr.mxu0 0.0
      %324 = vmatpush2.msra.mxu0 0.0
      %325 = vmatprep.subr.mxu0 0.0
      %326 = vmatpush2.msra.mxu0 0.0
      %327 = vmatprep.subr.mxu0 0.0
      %328 = vmatpush2.msra.mxu0 0.0
      %329 = vmatprep.subr.mxu0 0.0
      %330 = vmatpush2.msra.mxu0 0.0
      %331 = vmatprep.subr.mxu0 0.0
      %332 = vmatpush2.msra.mxu0 0.0
      %333 = vmatprep.subr.mxu0 0.0
      %334 = vmatpush2.msra.mxu0 0.0
      %335 = vmatprep.subr.mxu0 0.0
      %336 = vmatpush2.msra.mxu0 0.0
      %337 = vmatprep.subr.mxu0 0.0
      %338 = vmatpush2.msra.mxu0 0.0
      %339 = vmatprep.mubr.f32.mxu0 0.0
      %340 = vmatmul.mubr.f32.gmra.mxu0 %v202
      %v341 = vpop.f32.mrf.mxu0
      %v342 = vadd.f32 0.0, %v341
      %v343 = vpop.f32.mrf.mxu0
      %344 = vdwg.mxu0
      %v346 = vsel %vm200, %v174, 0
      %348 = vmatprep.subr.mxu0 0.0
      %349 = vmatpush1.msra.mxu0 0.0
      %350 = vmatprep.subr.mxu0 0.0
      %351 = vmatpush1.msra.mxu0 0.0
      %352 = vmatprep.subr.mxu0 0.0
      %353 = vmatpush1.msra.mxu0 0.0
      %354 = vmatprep.subr.mxu0 0.0
      %355 = vmatpush1.msra.mxu0 0.0
      %356 = vmatprep.subr.mxu0 0.0
      %357 = vmatpush1.msra.mxu0 0.0
      %358 = vmatprep.subr.mxu0 0.0
      %359 = vmatpush1.msra.mxu0 0.0
      %360 = vmatprep.subr.mxu0 0.0
      %361 = vmatpush1.msra.mxu0 0.0
      %362 = vmatprep.subr.mxu0 0.0
      %363 = vmatpush1.msra.mxu0 0.0
      %364 = vmatprep.subr.mxu0 0.0
      %365 = vmatpush1.msra.mxu0 0.0
      %366 = vmatprep.subr.mxu0 0.0
      %367 = vmatpush1.msra.mxu0 0.0
      %368 = vmatprep.subr.mxu0 0.0
      %369 = vmatpush1.msra.mxu0 0.0
      %370 = vmatprep.subr.mxu0 0.0
      %371 = vmatpush1.msra.mxu0 0.0
      %372 = vmatprep.subr.mxu0 0.0
      %373 = vmatpush1.msra.mxu0 0.0
      %374 = vmatprep.subr.mxu0 0.0
      %375 = vmatpush1.msra.mxu0 0.0
      %376 = vmatprep.subr.mxu0 0.0
      %377 = vmatpush1.msra.mxu0 0.0
      %378 = vmatprep.subr.mxu0 %v172
      %379 = vmatpush1.msra.mxu0 %v171
      %380 = vmatprep.subr.mxu0 0.0
      %381 = vmatpush2.msra.mxu0 0.0
      %382 = vmatprep.subr.mxu0 0.0
      %383 = vmatpush2.msra.mxu0 0.0
      %384 = vmatprep.subr.mxu0 0.0
      %385 = vmatpush2.msra.mxu0 0.0
      %386 = vmatprep.subr.mxu0 0.0
      %387 = vmatpush2.msra.mxu0 0.0
      %388 = vmatprep.subr.mxu0 0.0
      %389 = vmatpush2.msra.mxu0 0.0
      %390 = vmatprep.subr.mxu0 0.0
      %391 = vmatpush2.msra.mxu0 0.0
      %392 = vmatprep.subr.mxu0 0.0
      %393 = vmatpush2.msra.mxu0 0.0
      %394 = vmatprep.subr.mxu0 0.0
      %395 = vmatpush2.msra.mxu0 0.0
      %396 = vmatprep.subr.mxu0 0.0
      %397 = vmatpush2.msra.mxu0 0.0
      %398 = vmatprep.subr.mxu0 0.0
      %399 = vmatpush2.msra.mxu0 0.0
      %400 = vmatprep.subr.mxu0 0.0
      %401 = vmatpush2.msra.mxu0 0.0
      %402 = vmatprep.subr.mxu0 0.0
      %403 = vmatpush2.msra.mxu0 0.0
      %404 = vmatprep.subr.mxu0 0.0
      %405 = vmatpush2.msra.mxu0 0.0
      %406 = vmatprep.subr.mxu0 0.0
      %407 = vmatpush2.msra.mxu0 0.0
      %408 = vmatprep.subr.mxu0 0.0
      %409 = vmatpush2.msra.mxu0 0.0
      %410 = vmatprep.subr.mxu0 0.0
      %411 = vmatpush2.msra.mxu0 0.0
      %412 = vmatprep.mubr.f32.mxu0 0.0
      %413 = vmatmul.mubr.f32.gmra.mxu0 %v346
      %v414 = vpop.f32.mrf.mxu0
      %v415 = vadd.f32 %v271, %v414
      %v416 = vpop.f32.mrf.mxu0
      %v417 = vadd.f32 %v273, %v416
      %418 = vdwg.mxu0
      %419 = vmatprep.subr.mxu0 0.0
      %420 = vmatpush1.msra.mxu0 0.0
      %421 = vmatprep.subr.mxu0 0.0
      %422 = vmatpush1.msra.mxu0 0.0
      %423 = vmatprep.subr.mxu0 0.0
      %424 = vmatpush1.msra.mxu0 0.0
      %425 = vmatprep.subr.mxu0 0.0
      %426 = vmatpush1.msra.mxu0 0.0
      %427 = vmatprep.subr.mxu0 0.0
      %428 = vmatpush1.msra.mxu0 0.0
      %429 = vmatprep.subr.mxu0 0.0
      %430 = vmatpush1.msra.mxu0 0.0
      %431 = vmatprep.subr.mxu0 0.0
      %432 = vmatpush1.msra.mxu0 0.0
      %433 = vmatprep.subr.mxu0 0.0
      %434 = vmatpush1.msra.mxu0 0.0
      %435 = vmatprep.subr.mxu0 0.0
      %436 = vmatpush1.msra.mxu0 0.0
      %437 = vmatprep.subr.mxu0 0.0
      %438 = vmatpush1.msra.mxu0 0.0
      %439 = vmatprep.subr.mxu0 0.0
      %440 = vmatpush1.msra.mxu0 0.0
      %441 = vmatprep.subr.mxu0 0.0
      %442 = vmatpush1.msra.mxu0 0.0
      %443 = vmatprep.subr.mxu0 0.0
      %444 = vmatpush1.msra.mxu0 0.0
      %445 = vmatprep.subr.mxu0 0.0
      %446 = vmatpush1.msra.mxu0 0.0
      %447 = vmatprep.subr.mxu0 0.0
      %448 = vmatpush1.msra.mxu0 0.0
      %449 = vmatprep.subr.mxu0 0.0
      %450 = vmatpush1.msra.mxu0 %v173
      %451 = vmatprep.subr.mxu0 0.0
      %452 = vmatpush2.msra.mxu0 0.0
      %453 = vmatprep.subr.mxu0 0.0
      %454 = vmatpush2.msra.mxu0 0.0
      %455 = vmatprep.subr.mxu0 0.0
      %456 = vmatpush2.msra.mxu0 0.0
      %457 = vmatprep.subr.mxu0 0.0
      %458 = vmatpush2.msra.mxu0 0.0
      %459 = vmatprep.subr.mxu0 0.0
      %460 = vmatpush2.msra.mxu0 0.0
      %461 = vmatprep.subr.mxu0 0.0
      %462 = vmatpush2.msra.mxu0 0.0
      %463 = vmatprep.subr.mxu0 0.0
      %464 = vmatpush2.msra.mxu0 0.0
      %465 = vmatprep.subr.mxu0 0.0
      %466 = vmatpush2.msra.mxu0 0.0
      %467 = vmatprep.subr.mxu0 0.0
      %468 = vmatpush2.msra.mxu0 0.0
      %469 = vmatprep.subr.mxu0 0.0
      %470 = vmatpush2.msra.mxu0 0.0
      %471 = vmatprep.subr.mxu0 0.0
      %472 = vmatpush2.msra.mxu0 0.0
      %473 = vmatprep.subr.mxu0 0.0
      %474 = vmatpush2.msra.mxu0 0.0
      %475 = vmatprep.subr.mxu0 0.0
      %476 = vmatpush2.msra.mxu0 0.0
      %477 = vmatprep.subr.mxu0 0.0
      %478 = vmatpush2.msra.mxu0 0.0
      %479 = vmatprep.subr.mxu0 0.0
      %480 = vmatpush2.msra.mxu0 0.0
      %481 = vmatprep.subr.mxu0 0.0
      %482 = vmatpush2.msra.mxu0 0.0
      %483 = vmatprep.mubr.f32.mxu0 0.0
      %484 = vmatmul.mubr.f32.gmra.mxu0 %v346
      %v485 = vpop.f32.mrf.mxu0
      %v486 = vadd.f32 %v342, %v485
      %v487 = vpop.f32.mrf.mxu0
      %488 = vdwg.mxu0
      %s489 = scalar_lea.vmem %s0, 16
      %v490 = vld [vmem:[%s489] sm:$0xff]
      %491 = vrot.lane.b32.xlu0 %v175, 126
      %v492 = vpop.permute.xlu0 %491
      %493 = vrot.lane.b32.xlu0 %v176, 126
      %v494 = vpop.permute.xlu0 %493
      %495 = vrot.lane.b32.xlu0 %v177, 126
      %v496 = vpop.permute.xlu0 %495
      %497 = vrot.lane.b32.xlu0 %v178, 126
      %v498 = vpop.permute.xlu0 %497
      %vm499 = vcmask 1031168
      %v500 = vsel %vm499, %v492, %v494
      %v501 = vsel %vm499, %v494, %v496
      %v502 = vsel %vm499, %v496, %v498
      %v507 = vsel %vm200, %v490, 0
      %509 = vmatprep.subr.mxu0 0.0
      %510 = vmatpush1.msra.mxu0 0.0
      %511 = vmatprep.subr.mxu0 0.0
      %512 = vmatpush1.msra.mxu0 0.0
      %513 = vmatprep.subr.mxu0 0.0
      %514 = vmatpush1.msra.mxu0 0.0
      %515 = vmatprep.subr.mxu0 0.0
      %516 = vmatpush1.msra.mxu0 0.0
      %517 = vmatprep.subr.mxu0 0.0
      %518 = vmatpush1.msra.mxu0 0.0
      %519 = vmatprep.subr.mxu0 0.0
      %520 = vmatpush1.msra.mxu0 0.0
      %521 = vmatprep.subr.mxu0 0.0
      %522 = vmatpush1.msra.mxu0 0.0
      %523 = vmatprep.subr.mxu0 0.0
      %524 = vmatpush1.msra.mxu0 0.0
      %525 = vmatprep.subr.mxu0 0.0
      %526 = vmatpush1.msra.mxu0 0.0
      %527 = vmatprep.subr.mxu0 0.0
      %528 = vmatpush1.msra.mxu0 0.0
      %529 = vmatprep.subr.mxu0 0.0
      %530 = vmatpush1.msra.mxu0 0.0
      %531 = vmatprep.subr.mxu0 0.0
      %532 = vmatpush1.msra.mxu0 0.0
      %533 = vmatprep.subr.mxu0 0.0
      %534 = vmatpush1.msra.mxu0 0.0
      %535 = vmatprep.subr.mxu0 0.0
      %536 = vmatpush1.msra.mxu0 0.0
      %537 = vmatprep.subr.mxu0 0.0
      %538 = vmatpush1.msra.mxu0 0.0
      %539 = vmatprep.subr.mxu0 %v501
      %540 = vmatpush1.msra.mxu0 %v500
      %541 = vmatprep.subr.mxu0 0.0
      %542 = vmatpush2.msra.mxu0 0.0
      %543 = vmatprep.subr.mxu0 0.0
      %544 = vmatpush2.msra.mxu0 0.0
      %545 = vmatprep.subr.mxu0 0.0
      %546 = vmatpush2.msra.mxu0 0.0
      %547 = vmatprep.subr.mxu0 0.0
      %548 = vmatpush2.msra.mxu0 0.0
      %549 = vmatprep.subr.mxu0 0.0
      %550 = vmatpush2.msra.mxu0 0.0
      %551 = vmatprep.subr.mxu0 0.0
      %552 = vmatpush2.msra.mxu0 0.0
      %553 = vmatprep.subr.mxu0 0.0
      %554 = vmatpush2.msra.mxu0 0.0
      %555 = vmatprep.subr.mxu0 0.0
      %556 = vmatpush2.msra.mxu0 0.0
      %557 = vmatprep.subr.mxu0 0.0
      %558 = vmatpush2.msra.mxu0 0.0
      %559 = vmatprep.subr.mxu0 0.0
      %560 = vmatpush2.msra.mxu0 0.0
      %561 = vmatprep.subr.mxu0 0.0
      %562 = vmatpush2.msra.mxu0 0.0
      %563 = vmatprep.subr.mxu0 0.0
      %564 = vmatpush2.msra.mxu0 0.0
      %565 = vmatprep.subr.mxu0 0.0
      %566 = vmatpush2.msra.mxu0 0.0
      %567 = vmatprep.subr.mxu0 0.0
      %568 = vmatpush2.msra.mxu0 0.0
      %569 = vmatprep.subr.mxu0 0.0
      %570 = vmatpush2.msra.mxu0 0.0
      %571 = vmatprep.subr.mxu0 0.0
      %572 = vmatpush2.msra.mxu0 0.0
      %573 = vmatprep.mubr.f32.mxu0 0.0
      %574 = vmatmul.mubr.f32.gmra.mxu0 %v507
      %v575 = vpop.f32.mrf.mxu0
      %v576 = vadd.f32 0.0, %v575
      %v577 = vpop.f32.mrf.mxu0
      %v578 = vadd.f32 0.0, %v577
      %579 = vdwg.mxu0
      %580 = vmatprep.subr.mxu0 0.0
      %581 = vmatpush1.msra.mxu0 0.0
      %582 = vmatprep.subr.mxu0 0.0
      %583 = vmatpush1.msra.mxu0 0.0
      %584 = vmatprep.subr.mxu0 0.0
      %585 = vmatpush1.msra.mxu0 0.0
      %586 = vmatprep.subr.mxu0 0.0
      %587 = vmatpush1.msra.mxu0 0.0
      %588 = vmatprep.subr.mxu0 0.0
      %589 = vmatpush1.msra.mxu0 0.0
      %590 = vmatprep.subr.mxu0 0.0
      %591 = vmatpush1.msra.mxu0 0.0
      %592 = vmatprep.subr.mxu0 0.0
      %593 = vmatpush1.msra.mxu0 0.0
      %594 = vmatprep.subr.mxu0 0.0
      %595 = vmatpush1.msra.mxu0 0.0
      %596 = vmatprep.subr.mxu0 0.0
      %597 = vmatpush1.msra.mxu0 0.0
      %598 = vmatprep.subr.mxu0 0.0
      %599 = vmatpush1.msra.mxu0 0.0
      %600 = vmatprep.subr.mxu0 0.0
      %601 = vmatpush1.msra.mxu0 0.0
      %602 = vmatprep.subr.mxu0 0.0
      %603 = vmatpush1.msra.mxu0 0.0
      %604 = vmatprep.subr.mxu0 0.0
      %605 = vmatpush1.msra.mxu0 0.0
      %606 = vmatprep.subr.mxu0 0.0
      %607 = vmatpush1.msra.mxu0 0.0
      %608 = vmatprep.subr.mxu0 0.0
      %609 = vmatpush1.msra.mxu0 0.0
      %610 = vmatprep.subr.mxu0 0.0
      %611 = vmatpush1.msra.mxu0 %v502
      %612 = vmatprep.subr.mxu0 0.0
      %613 = vmatpush2.msra.mxu0 0.0
      %614 = vmatprep.subr.mxu0 0.0
      %615 = vmatpush2.msra.mxu0 0.0
      %616 = vmatprep.subr.mxu0 0.0
      %617 = vmatpush2.msra.mxu0 0.0
      %618 = vmatprep.subr.mxu0 0.0
      %619 = vmatpush2.msra.mxu0 0.0
      %620 = vmatprep.subr.mxu0 0.0
      %621 = vmatpush2.msra.mxu0 0.0
      %622 = vmatprep.subr.mxu0 0.0
      %623 = vmatpush2.msra.mxu0 0.0
      %624 = vmatprep.subr.mxu0 0.0
      %625 = vmatpush2.msra.mxu0 0.0
      %626 = vmatprep.subr.mxu0 0.0
      %627 = vmatpush2.msra.mxu0 0.0
      %628 = vmatprep.subr.mxu0 0.0
      %629 = vmatpush2.msra.mxu0 0.0
      %630 = vmatprep.subr.mxu0 0.0
      %631 = vmatpush2.msra.mxu0 0.0
      %632 = vmatprep.subr.mxu0 0.0
      %633 = vmatpush2.msra.mxu0 0.0
      %634 = vmatprep.subr.mxu0 0.0
      %635 = vmatpush2.msra.mxu0 0.0
      %636 = vmatprep.subr.mxu0 0.0
      %637 = vmatpush2.msra.mxu0 0.0
      %638 = vmatprep.subr.mxu0 0.0
      %639 = vmatpush2.msra.mxu0 0.0
      %640 = vmatprep.subr.mxu0 0.0
      %641 = vmatpush2.msra.mxu0 0.0
      %642 = vmatprep.subr.mxu0 0.0
      %643 = vmatpush2.msra.mxu0 0.0
      %644 = vmatprep.mubr.f32.mxu0 0.0
      %645 = vmatmul.mubr.f32.gmra.mxu0 %v507
      %v646 = vpop.f32.mrf.mxu0
      %v647 = vadd.f32 0.0, %v646
      %v648 = vpop.f32.mrf.mxu0
      %649 = vdwg.mxu0
      %v650 = vadd.f32 %v415, %v576
      %v651 = vadd.f32 %v417, %v578
      %v652 = vadd.f32 %v486, %v647
      %s653 = scalar_lea.vmem %s0, 24
      %v654 = vld [vmem:[%s653] sm:$0xff]
      %655 = vrot.lane.b32.xlu0 %v175, 110
      %v656 = vpop.permute.xlu0 %655
      %657 = vrot.lane.b32.xlu0 %v176, 110
      %v658 = vpop.permute.xlu0 %657
      %659 = vrot.lane.b32.xlu0 %v177, 110
      %v660 = vpop.permute.xlu0 %659
      %661 = vrot.lane.b32.xlu0 %v178, 110
      %v662 = vpop.permute.xlu0 %661
      %vm663 = vcmask 900096
      %v664 = vsel %vm663, %v656, %v658
      %v665 = vsel %vm663, %v658, %v660
      %v666 = vsel %vm663, %v660, %v662
      %v671 = vsel %vm200, %v654, 0
      %673 = vmatprep.subr.mxu0 0.0
      %674 = vmatpush1.msra.mxu0 0.0
      %675 = vmatprep.subr.mxu0 0.0
      %676 = vmatpush1.msra.mxu0 0.0
      %677 = vmatprep.subr.mxu0 0.0
      %678 = vmatpush1.msra.mxu0 0.0
      %679 = vmatprep.subr.mxu0 0.0
      %680 = vmatpush1.msra.mxu0 0.0
      %681 = vmatprep.subr.mxu0 0.0
      %682 = vmatpush1.msra.mxu0 0.0
      %683 = vmatprep.subr.mxu0 0.0
      %684 = vmatpush1.msra.mxu0 0.0
      %685 = vmatprep.subr.mxu0 0.0
      %686 = vmatpush1.msra.mxu0 0.0
      %687 = vmatprep.subr.mxu0 0.0
      %688 = vmatpush1.msra.mxu0 0.0
      %689 = vmatprep.subr.mxu0 0.0
      %690 = vmatpush1.msra.mxu0 0.0
      %691 = vmatprep.subr.mxu0 0.0
      %692 = vmatpush1.msra.mxu0 0.0
      %693 = vmatprep.subr.mxu0 0.0
      %694 = vmatpush1.msra.mxu0 0.0
      %695 = vmatprep.subr.mxu0 0.0
      %696 = vmatpush1.msra.mxu0 0.0
      %697 = vmatprep.subr.mxu0 0.0
      %698 = vmatpush1.msra.mxu0 0.0
      %699 = vmatprep.subr.mxu0 0.0
      %700 = vmatpush1.msra.mxu0 0.0
      %701 = vmatprep.subr.mxu0 0.0
      %702 = vmatpush1.msra.mxu0 0.0
      %703 = vmatprep.subr.mxu0 %v665
      %704 = vmatpush1.msra.mxu0 %v664
      %705 = vmatprep.subr.mxu0 0.0
      %706 = vmatpush2.msra.mxu0 0.0
      %707 = vmatprep.subr.mxu0 0.0
      %708 = vmatpush2.msra.mxu0 0.0
      %709 = vmatprep.subr.mxu0 0.0
      %710 = vmatpush2.msra.mxu0 0.0
      %711 = vmatprep.subr.mxu0 0.0
      %712 = vmatpush2.msra.mxu0 0.0
      %713 = vmatprep.subr.mxu0 0.0
      %714 = vmatpush2.msra.mxu0 0.0
      %715 = vmatprep.subr.mxu0 0.0
      %716 = vmatpush2.msra.mxu0 0.0
      %717 = vmatprep.subr.mxu0 0.0
      %718 = vmatpush2.msra.mxu0 0.0
      %719 = vmatprep.subr.mxu0 0.0
      %720 = vmatpush2.msra.mxu0 0.0
      %721 = vmatprep.subr.mxu0 0.0
      %722 = vmatpush2.msra.mxu0 0.0
      %723 = vmatprep.subr.mxu0 0.0
      %724 = vmatpush2.msra.mxu0 0.0
      %725 = vmatprep.subr.mxu0 0.0
      %726 = vmatpush2.msra.mxu0 0.0
      %727 = vmatprep.subr.mxu0 0.0
      %728 = vmatpush2.msra.mxu0 0.0
      %729 = vmatprep.subr.mxu0 0.0
      %730 = vmatpush2.msra.mxu0 0.0
      %731 = vmatprep.subr.mxu0 0.0
      %732 = vmatpush2.msra.mxu0 0.0
      %733 = vmatprep.subr.mxu0 0.0
      %734 = vmatpush2.msra.mxu0 0.0
      %735 = vmatprep.subr.mxu0 0.0
      %736 = vmatpush2.msra.mxu0 0.0
      %737 = vmatprep.mubr.f32.mxu0 0.0
      %738 = vmatmul.mubr.f32.gmra.mxu0 %v671
      %v739 = vpop.f32.mrf.mxu0
      %v740 = vadd.f32 0.0, %v739
      %v741 = vpop.f32.mrf.mxu0
      %v742 = vadd.f32 0.0, %v741
      %743 = vdwg.mxu0
      %744 = vmatprep.subr.mxu0 0.0
      %745 = vmatpush1.msra.mxu0 0.0
      %746 = vmatprep.subr.mxu0 0.0
      %747 = vmatpush1.msra.mxu0 0.0
      %748 = vmatprep.subr.mxu0 0.0
      %749 = vmatpush1.msra.mxu0 0.0
      %750 = vmatprep.subr.mxu0 0.0
      %751 = vmatpush1.msra.mxu0 0.0
      %752 = vmatprep.subr.mxu0 0.0
      %753 = vmatpush1.msra.mxu0 0.0
      %754 = vmatprep.subr.mxu0 0.0
      %755 = vmatpush1.msra.mxu0 0.0
      %756 = vmatprep.subr.mxu0 0.0
      %757 = vmatpush1.msra.mxu0 0.0
      %758 = vmatprep.subr.mxu0 0.0
      %759 = vmatpush1.msra.mxu0 0.0
      %760 = vmatprep.subr.mxu0 0.0
      %761 = vmatpush1.msra.mxu0 0.0
      %762 = vmatprep.subr.mxu0 0.0
      %763 = vmatpush1.msra.mxu0 0.0
      %764 = vmatprep.subr.mxu0 0.0
      %765 = vmatpush1.msra.mxu0 0.0
      %766 = vmatprep.subr.mxu0 0.0
      %767 = vmatpush1.msra.mxu0 0.0
      %768 = vmatprep.subr.mxu0 0.0
      %769 = vmatpush1.msra.mxu0 0.0
      %770 = vmatprep.subr.mxu0 0.0
      %771 = vmatpush1.msra.mxu0 0.0
      %772 = vmatprep.subr.mxu0 0.0
      %773 = vmatpush1.msra.mxu0 0.0
      %774 = vmatprep.subr.mxu0 0.0
      %775 = vmatpush1.msra.mxu0 %v666
      %776 = vmatprep.subr.mxu0 0.0
      %777 = vmatpush2.msra.mxu0 0.0
      %778 = vmatprep.subr.mxu0 0.0
      %779 = vmatpush2.msra.mxu0 0.0
      %780 = vmatprep.subr.mxu0 0.0
      %781 = vmatpush2.msra.mxu0 0.0
      %782 = vmatprep.subr.mxu0 0.0
      %783 = vmatpush2.msra.mxu0 0.0
      %784 = vmatprep.subr.mxu0 0.0
      %785 = vmatpush2.msra.mxu0 0.0
      %786 = vmatprep.subr.mxu0 0.0
      %787 = vmatpush2.msra.mxu0 0.0
      %788 = vmatprep.subr.mxu0 0.0
      %789 = vmatpush2.msra.mxu0 0.0
      %790 = vmatprep.subr.mxu0 0.0
      %791 = vmatpush2.msra.mxu0 0.0
      %792 = vmatprep.subr.mxu0 0.0
      %793 = vmatpush2.msra.mxu0 0.0
      %794 = vmatprep.subr.mxu0 0.0
      %795 = vmatpush2.msra.mxu0 0.0
      %796 = vmatprep.subr.mxu0 0.0
      %797 = vmatpush2.msra.mxu0 0.0
      %798 = vmatprep.subr.mxu0 0.0
      %799 = vmatpush2.msra.mxu0 0.0
      %800 = vmatprep.subr.mxu0 0.0
      %801 = vmatpush2.msra.mxu0 0.0
      %802 = vmatprep.subr.mxu0 0.0
      %803 = vmatpush2.msra.mxu0 0.0
      %804 = vmatprep.subr.mxu0 0.0
      %805 = vmatpush2.msra.mxu0 0.0
      %806 = vmatprep.subr.mxu0 0.0
      %807 = vmatpush2.msra.mxu0 0.0
      %808 = vmatprep.mubr.f32.mxu0 0.0
      %809 = vmatmul.mubr.f32.gmra.mxu0 %v671
      %v810 = vpop.f32.mrf.mxu0
      %v811 = vadd.f32 0.0, %v810
      %v812 = vpop.f32.mrf.mxu0
      %813 = vdwg.mxu0
      %v814 = vadd.f32 %v650, %v740
      %v815 = vadd.f32 %v651, %v742
      %v816 = vadd.f32 %v652, %v811
      %s817 = scalar_lea.vmem %s0, 32
      %v818 = vld [vmem:[%s817] sm:$0xff]
      %819 = vrot.lane.b32.xlu0 %v175, 109
      %v820 = vpop.permute.xlu0 %819
      %821 = vrot.lane.b32.xlu0 %v176, 109
      %v822 = vpop.permute.xlu0 %821
      %823 = vrot.lane.b32.xlu0 %v177, 109
      %v824 = vpop.permute.xlu0 %823
      %825 = vrot.lane.b32.xlu0 %v178, 109
      %v826 = vpop.permute.xlu0 %825
      %vm827 = vcmask 891904
      %v828 = vsel %vm827, %v820, %v822
      %v829 = vsel %vm827, %v822, %v824
      %v830 = vsel %vm827, %v824, %v826
      %v835 = vsel %vm200, %v818, 0
      %837 = vmatprep.subr.mxu0 0.0
      %838 = vmatpush1.msra.mxu0 0.0
      %839 = vmatprep.subr.mxu0 0.0
      %840 = vmatpush1.msra.mxu0 0.0
      %841 = vmatprep.subr.mxu0 0.0
      %842 = vmatpush1.msra.mxu0 0.0
      %843 = vmatprep.subr.mxu0 0.0
      %844 = vmatpush1.msra.mxu0 0.0
      %845 = vmatprep.subr.mxu0 0.0
      %846 = vmatpush1.msra.mxu0 0.0
      %847 = vmatprep.subr.mxu0 0.0
      %848 = vmatpush1.msra.mxu0 0.0
      %849 = vmatprep.subr.mxu0 0.0
      %850 = vmatpush1.msra.mxu0 0.0
      %851 = vmatprep.subr.mxu0 0.0
      %852 = vmatpush1.msra.mxu0 0.0
      %853 = vmatprep.subr.mxu0 0.0
      %854 = vmatpush1.msra.mxu0 0.0
      %855 = vmatprep.subr.mxu0 0.0
      %856 = vmatpush1.msra.mxu0 0.0
      %857 = vmatprep.subr.mxu0 0.0
      %858 = vmatpush1.msra.mxu0 0.0
      %859 = vmatprep.subr.mxu0 0.0
      %860 = vmatpush1.msra.mxu0 0.0
      %861 = vmatprep.subr.mxu0 0.0
      %862 = vmatpush1.msra.mxu0 0.0
      %863 = vmatprep.subr.mxu0 0.0
      %864 = vmatpush1.msra.mxu0 0.0
      %865 = vmatprep.subr.mxu0 0.0
      %866 = vmatpush1.msra.mxu0 0.0
      %867 = vmatprep.subr.mxu0 %v829
      %868 = vmatpush1.msra.mxu0 %v828
      %869 = vmatprep.subr.mxu0 0.0
      %870 = vmatpush2.msra.mxu0 0.0
      %871 = vmatprep.subr.mxu0 0.0
      %872 = vmatpush2.msra.mxu0 0.0
      %873 = vmatprep.subr.mxu0 0.0
      %874 = vmatpush2.msra.mxu0 0.0
      %875 = vmatprep.subr.mxu0 0.0
      %876 = vmatpush2.msra.mxu0 0.0
      %877 = vmatprep.subr.mxu0 0.0
      %878 = vmatpush2.msra.mxu0 0.0
      %879 = vmatprep.subr.mxu0 0.0
      %880 = vmatpush2.msra.mxu0 0.0
      %881 = vmatprep.subr.mxu0 0.0
      %882 = vmatpush2.msra.mxu0 0.0
      %883 = vmatprep.subr.mxu0 0.0
      %884 = vmatpush2.msra.mxu0 0.0
      %885 = vmatprep.subr.mxu0 0.0
      %886 = vmatpush2.msra.mxu0 0.0
      %887 = vmatprep.subr.mxu0 0.0
      %888 = vmatpush2.msra.mxu0 0.0
      %889 = vmatprep.subr.mxu0 0.0
      %890 = vmatpush2.msra.mxu0 0.0
      %891 = vmatprep.subr.mxu0 0.0
      %892 = vmatpush2.msra.mxu0 0.0
      %893 = vmatprep.subr.mxu0 0.0
      %894 = vmatpush2.msra.mxu0 0.0
      %895 = vmatprep.subr.mxu0 0.0
      %896 = vmatpush2.msra.mxu0 0.0
      %897 = vmatprep.subr.mxu0 0.0
      %898 = vmatpush2.msra.mxu0 0.0
      %899 = vmatprep.subr.mxu0 0.0
      %900 = vmatpush2.msra.mxu0 0.0
      %901 = vmatprep.mubr.f32.mxu0 0.0
      %902 = vmatmul.mubr.f32.gmra.mxu0 %v835
      %v903 = vpop.f32.mrf.mxu0
      %v904 = vadd.f32 0.0, %v903
      %v905 = vpop.f32.mrf.mxu0
      %v906 = vadd.f32 0.0, %v905
      %907 = vdwg.mxu0
      %908 = vmatprep.subr.mxu0 0.0
      %909 = vmatpush1.msra.mxu0 0.0
      %910 = vmatprep.subr.mxu0 0.0
      %911 = vmatpush1.msra.mxu0 0.0
      %912 = vmatprep.subr.mxu0 0.0
      %913 = vmatpush1.msra.mxu0 0.0
      %914 = vmatprep.subr.mxu0 0.0
      %915 = vmatpush1.msra.mxu0 0.0
      %916 = vmatprep.subr.mxu0 0.0
      %917 = vmatpush1.msra.mxu0 0.0
      %918 = vmatprep.subr.mxu0 0.0
      %919 = vmatpush1.msra.mxu0 0.0
      %920 = vmatprep.subr.mxu0 0.0
      %921 = vmatpush1.msra.mxu0 0.0
      %922 = vmatprep.subr.mxu0 0.0
      %923 = vmatpush1.msra.mxu0 0.0
      %924 = vmatprep.subr.mxu0 0.0
      %925 = vmatpush1.msra.mxu0 0.0
      %926 = vmatprep.subr.mxu0 0.0
      %927 = vmatpush1.msra.mxu0 0.0
      %928 = vmatprep.subr.mxu0 0.0
      %929 = vmatpush1.msra.mxu0 0.0
      %930 = vmatprep.subr.mxu0 0.0
      %931 = vmatpush1.msra.mxu0 0.0
      %932 = vmatprep.subr.mxu0 0.0
      %933 = vmatpush1.msra.mxu0 0.0
      %934 = vmatprep.subr.mxu0 0.0
      %935 = vmatpush1.msra.mxu0 0.0
      %936 = vmatprep.subr.mxu0 0.0
      %937 = vmatpush1.msra.mxu0 0.0
      %938 = vmatprep.subr.mxu0 0.0
      %939 = vmatpush1.msra.mxu0 %v830
      %940 = vmatprep.subr.mxu0 0.0
      %941 = vmatpush2.msra.mxu0 0.0
      %942 = vmatprep.subr.mxu0 0.0
      %943 = vmatpush2.msra.mxu0 0.0
      %944 = vmatprep.subr.mxu0 0.0
      %945 = vmatpush2.msra.mxu0 0.0
      %946 = vmatprep.subr.mxu0 0.0
      %947 = vmatpush2.msra.mxu0 0.0
      %948 = vmatprep.subr.mxu0 0.0
      %949 = vmatpush2.msra.mxu0 0.0
      %950 = vmatprep.subr.mxu0 0.0
      %951 = vmatpush2.msra.mxu0 0.0
      %952 = vmatprep.subr.mxu0 0.0
      %953 = vmatpush2.msra.mxu0 0.0
      %954 = vmatprep.subr.mxu0 0.0
      %955 = vmatpush2.msra.mxu0 0.0
      %956 = vmatprep.subr.mxu0 0.0
      %957 = vmatpush2.msra.mxu0 0.0
      %958 = vmatprep.subr.mxu0 0.0
      %959 = vmatpush2.msra.mxu0 0.0
      %960 = vmatprep.subr.mxu0 0.0
      %961 = vmatpush2.msra.mxu0 0.0
      %962 = vmatprep.subr.mxu0 0.0
      %963 = vmatpush2.msra.mxu0 0.0
      %964 = vmatprep.subr.mxu0 0.0
      %965 = vmatpush2.msra.mxu0 0.0
      %966 = vmatprep.subr.mxu0 0.0
      %967 = vmatpush2.msra.mxu0 0.0
      %968 = vmatprep.subr.mxu0 0.0
      %969 = vmatpush2.msra.mxu0 0.0
      %970 = vmatprep.subr.mxu0 0.0
      %971 = vmatpush2.msra.mxu0 0.0
      %972 = vmatprep.mubr.f32.mxu0 0.0
      %973 = vmatmul.mubr.f32.gmra.mxu0 %v835
      %v974 = vpop.f32.mrf.mxu0
      %v975 = vadd.f32 0.0, %v974
      %v976 = vpop.f32.mrf.mxu0
      %977 = vdwg.mxu0
      %v978 = vadd.f32 %v814, %v904
      %v979 = vadd.f32 %v815, %v906
      %v980 = vadd.f32 %v816, %v975
      %s981 = scalar_lea.vmem %s0, 40
      %v982 = vld [vmem:[%s981] sm:$0xff]
      %983 = vrot.lane.b32.xlu0 %v175, 108
      %v984 = vpop.permute.xlu0 %983
      %985 = vrot.lane.b32.xlu0 %v176, 108
      %v986 = vpop.permute.xlu0 %985
      %987 = vrot.lane.b32.xlu0 %v177, 108
      %v988 = vpop.permute.xlu0 %987
      %989 = vrot.lane.b32.xlu0 %v178, 108
      %v990 = vpop.permute.xlu0 %989
      %vm991 = vcmask 883712
      %v992 = vsel %vm991, %v984, %v986
      %v993 = vsel %vm991, %v986, %v988
      %v994 = vsel %vm991, %v988, %v990
      %v999 = vsel %vm200, %v982, 0
      %1001 = vmatprep.subr.mxu0 0.0
      %1002 = vmatpush1.msra.mxu0 0.0
      %1003 = vmatprep.subr.mxu0 0.0
      %1004 = vmatpush1.msra.mxu0 0.0
      %1005 = vmatprep.subr.mxu0 0.0
      %1006 = vmatpush1.msra.mxu0 0.0
      %1007 = vmatprep.subr.mxu0 0.0
      %1008 = vmatpush1.msra.mxu0 0.0
      %1009 = vmatprep.subr.mxu0 0.0
      %1010 = vmatpush1.msra.mxu0 0.0
      %1011 = vmatprep.subr.mxu0 0.0
      %1012 = vmatpush1.msra.mxu0 0.0
      %1013 = vmatprep.subr.mxu0 0.0
      %1014 = vmatpush1.msra.mxu0 0.0
      %1015 = vmatprep.subr.mxu0 0.0
      %1016 = vmatpush1.msra.mxu0 0.0
      %1017 = vmatprep.subr.mxu0 0.0
      %1018 = vmatpush1.msra.mxu0 0.0
      %1019 = vmatprep.subr.mxu0 0.0
      %1020 = vmatpush1.msra.mxu0 0.0
      %1021 = vmatprep.subr.mxu0 0.0
      %1022 = vmatpush1.msra.mxu0 0.0
      %1023 = vmatprep.subr.mxu0 0.0
      %1024 = vmatpush1.msra.mxu0 0.0
      %1025 = vmatprep.subr.mxu0 0.0
      %1026 = vmatpush1.msra.mxu0 0.0
      %1027 = vmatprep.subr.mxu0 0.0
      %1028 = vmatpush1.msra.mxu0 0.0
      %1029 = vmatprep.subr.mxu0 0.0
      %1030 = vmatpush1.msra.mxu0 0.0
      %1031 = vmatprep.subr.mxu0 %v993
      %1032 = vmatpush1.msra.mxu0 %v992
      %1033 = vmatprep.subr.mxu0 0.0
      %1034 = vmatpush2.msra.mxu0 0.0
      %1035 = vmatprep.subr.mxu0 0.0
      %1036 = vmatpush2.msra.mxu0 0.0
      %1037 = vmatprep.subr.mxu0 0.0
      %1038 = vmatpush2.msra.mxu0 0.0
      %1039 = vmatprep.subr.mxu0 0.0
      %1040 = vmatpush2.msra.mxu0 0.0
      %1041 = vmatprep.subr.mxu0 0.0
      %1042 = vmatpush2.msra.mxu0 0.0
      %1043 = vmatprep.subr.mxu0 0.0
      %1044 = vmatpush2.msra.mxu0 0.0
      %1045 = vmatprep.subr.mxu0 0.0
      %1046 = vmatpush2.msra.mxu0 0.0
      %1047 = vmatprep.subr.mxu0 0.0
      %1048 = vmatpush2.msra.mxu0 0.0
      %1049 = vmatprep.subr.mxu0 0.0
      %1050 = vmatpush2.msra.mxu0 0.0
      %1051 = vmatprep.subr.mxu0 0.0
      %1052 = vmatpush2.msra.mxu0 0.0
      %1053 = vmatprep.subr.mxu0 0.0
      %1054 = vmatpush2.msra.mxu0 0.0
      %1055 = vmatprep.subr.mxu0 0.0
      %1056 = vmatpush2.msra.mxu0 0.0
      %1057 = vmatprep.subr.mxu0 0.0
      %1058 = vmatpush2.msra.mxu0 0.0
      %1059 = vmatprep.subr.mxu0 0.0
      %1060 = vmatpush2.msra.mxu0 0.0
      %1061 = vmatprep.subr.mxu0 0.0
      %1062 = vmatpush2.msra.mxu0 0.0
      %1063 = vmatprep.subr.mxu0 0.0
      %1064 = vmatpush2.msra.mxu0 0.0
      %1065 = vmatprep.mubr.f32.mxu0 0.0
      %1066 = vmatmul.mubr.f32.gmra.mxu0 %v999
      %v1067 = vpop.f32.mrf.mxu0
      %v1068 = vadd.f32 0.0, %v1067
      %v1069 = vpop.f32.mrf.mxu0
      %v1070 = vadd.f32 0.0, %v1069
      %1071 = vdwg.mxu0
      %1072 = vmatprep.subr.mxu0 0.0
      %1073 = vmatpush1.msra.mxu0 0.0
      %1074 = vmatprep.subr.mxu0 0.0
      %1075 = vmatpush1.msra.mxu0 0.0
      %1076 = vmatprep.subr.mxu0 0.0
      %1077 = vmatpush1.msra.mxu0 0.0
      %1078 = vmatprep.subr.mxu0 0.0
      %1079 = vmatpush1.msra.mxu0 0.0
      %1080 = vmatprep.subr.mxu0 0.0
      %1081 = vmatpush1.msra.mxu0 0.0
      %1082 = vmatprep.subr.mxu0 0.0
      %1083 = vmatpush1.msra.mxu0 0.0
      %1084 = vmatprep.subr.mxu0 0.0
      %1085 = vmatpush1.msra.mxu0 0.0
      %1086 = vmatprep.subr.mxu0 0.0
      %1087 = vmatpush1.msra.mxu0 0.0
      %1088 = vmatprep.subr.mxu0 0.0
      %1089 = vmatpush1.msra.mxu0 0.0
      %1090 = vmatprep.subr.mxu0 0.0
      %1091 = vmatpush1.msra.mxu0 0.0
      %1092 = vmatprep.subr.mxu0 0.0
      %1093 = vmatpush1.msra.mxu0 0.0
      %1094 = vmatprep.subr.mxu0 0.0
      %1095 = vmatpush1.msra.mxu0 0.0
      %1096 = vmatprep.subr.mxu0 0.0
      %1097 = vmatpush1.msra.mxu0 0.0
      %1098 = vmatprep.subr.mxu0 0.0
      %1099 = vmatpush1.msra.mxu0 0.0
      %1100 = vmatprep.subr.mxu0 0.0
      %1101 = vmatpush1.msra.mxu0 0.0
      %1102 = vmatprep.subr.mxu0 0.0
      %1103 = vmatpush1.msra.mxu0 %v994
      %1104 = vmatprep.subr.mxu0 0.0
      %1105 = vmatpush2.msra.mxu0 0.0
      %1106 = vmatprep.subr.mxu0 0.0
      %1107 = vmatpush2.msra.mxu0 0.0
      %1108 = vmatprep.subr.mxu0 0.0
      %1109 = vmatpush2.msra.mxu0 0.0
      %1110 = vmatprep.subr.mxu0 0.0
      %1111 = vmatpush2.msra.mxu0 0.0
      %1112 = vmatprep.subr.mxu0 0.0
      %1113 = vmatpush2.msra.mxu0 0.0
      %1114 = vmatprep.subr.mxu0 0.0
      %1115 = vmatpush2.msra.mxu0 0.0
      %1116 = vmatprep.subr.mxu0 0.0
      %1117 = vmatpush2.msra.mxu0 0.0
      %1118 = vmatprep.subr.mxu0 0.0
      %1119 = vmatpush2.msra.mxu0 0.0
      %1120 = vmatprep.subr.mxu0 0.0
      %1121 = vmatpush2.msra.mxu0 0.0
      %1122 = vmatprep.subr.mxu0 0.0
      %1123 = vmatpush2.msra.mxu0 0.0
      %1124 = vmatprep.subr.mxu0 0.0
      %1125 = vmatpush2.msra.mxu0 0.0
      %1126 = vmatprep.subr.mxu0 0.0
      %1127 = vmatpush2.msra.mxu0 0.0
      %1128 = vmatprep.subr.mxu0 0.0
      %1129 = vmatpush2.msra.mxu0 0.0
      %1130 = vmatprep.subr.mxu0 0.0
      %1131 = vmatpush2.msra.mxu0 0.0
      %1132 = vmatprep.subr.mxu0 0.0
      %1133 = vmatpush2.msra.mxu0 0.0
      %1134 = vmatprep.subr.mxu0 0.0
      %1135 = vmatpush2.msra.mxu0 0.0
      %1136 = vmatprep.mubr.f32.mxu0 0.0
      %1137 = vmatmul.mubr.f32.gmra.mxu0 %v999
      %v1138 = vpop.f32.mrf.mxu0
      %v1139 = vadd.f32 0.0, %v1138
      %v1140 = vpop.f32.mrf.mxu0
      %1141 = vdwg.mxu0
      %v1142 = vadd.f32 %v978, %v1068
      %v1143 = vadd.f32 %v979, %v1070
      %v1144 = vadd.f32 %v980, %v1139
      %s1145 = scalar_lea.vmem %s0, 48
      %v1146 = vld [vmem:[%s1145] sm:$0xff]
      %1147 = vrot.lane.b32.xlu0 %v175, 92
      %v1148 = vpop.permute.xlu0 %1147
      %1149 = vrot.lane.b32.xlu0 %v176, 92
      %v1150 = vpop.permute.xlu0 %1149
      %1151 = vrot.lane.b32.xlu0 %v177, 92
      %v1152 = vpop.permute.xlu0 %1151
      %1153 = vrot.lane.b32.xlu0 %v178, 92
      %v1154 = vpop.permute.xlu0 %1153
      %vm1155 = vcmask 752640
      %v1156 = vsel %vm1155, %v1148, %v1150
      %v1157 = vsel %vm1155, %v1150, %v1152
      %v1158 = vsel %vm1155, %v1152, %v1154
      %v1163 = vsel %vm200, %v1146, 0
      %1165 = vmatprep.subr.mxu0 0.0
      %1166 = vmatpush1.msra.mxu0 0.0
      %1167 = vmatprep.subr.mxu0 0.0
      %1168 = vmatpush1.msra.mxu0 0.0
      %1169 = vmatprep.subr.mxu0 0.0
      %1170 = vmatpush1.msra.mxu0 0.0
      %1171 = vmatprep.subr.mxu0 0.0
      %1172 = vmatpush1.msra.mxu0 0.0
      %1173 = vmatprep.subr.mxu0 0.0
      %1174 = vmatpush1.msra.mxu0 0.0
      %1175 = vmatprep.subr.mxu0 0.0
      %1176 = vmatpush1.msra.mxu0 0.0
      %1177 = vmatprep.subr.mxu0 0.0
      %1178 = vmatpush1.msra.mxu0 0.0
      %1179 = vmatprep.subr.mxu0 0.0
      %1180 = vmatpush1.msra.mxu0 0.0
      %1181 = vmatprep.subr.mxu0 0.0
      %1182 = vmatpush1.msra.mxu0 0.0
      %1183 = vmatprep.subr.mxu0 0.0
      %1184 = vmatpush1.msra.mxu0 0.0
      %1185 = vmatprep.subr.mxu0 0.0
      %1186 = vmatpush1.msra.mxu0 0.0
      %1187 = vmatprep.subr.mxu0 0.0
      %1188 = vmatpush1.msra.mxu0 0.0
      %1189 = vmatprep.subr.mxu0 0.0
      %1190 = vmatpush1.msra.mxu0 0.0
      %1191 = vmatprep.subr.mxu0 0.0
      %1192 = vmatpush1.msra.mxu0 0.0
      %1193 = vmatprep.subr.mxu0 0.0
      %1194 = vmatpush1.msra.mxu0 0.0
      %1195 = vmatprep.subr.mxu0 %v1157
      %1196 = vmatpush1.msra.mxu0 %v1156
      %1197 = vmatprep.subr.mxu0 0.0
      %1198 = vmatpush2.msra.mxu0 0.0
      %1199 = vmatprep.subr.mxu0 0.0
      %1200 = vmatpush2.msra.mxu0 0.0
      %1201 = vmatprep.subr.mxu0 0.0
      %1202 = vmatpush2.msra.mxu0 0.0
      %1203 = vmatprep.subr.mxu0 0.0
      %1204 = vmatpush2.msra.mxu0 0.0
      %1205 = vmatprep.subr.mxu0 0.0
      %1206 = vmatpush2.msra.mxu0 0.0
      %1207 = vmatprep.subr.mxu0 0.0
      %1208 = vmatpush2.msra.mxu0 0.0
      %1209 = vmatprep.subr.mxu0 0.0
      %1210 = vmatpush2.msra.mxu0 0.0
      %1211 = vmatprep.subr.mxu0 0.0
      %1212 = vmatpush2.msra.mxu0 0.0
      %1213 = vmatprep.subr.mxu0 0.0
      %1214 = vmatpush2.msra.mxu0 0.0
      %1215 = vmatprep.subr.mxu0 0.0
      %1216 = vmatpush2.msra.mxu0 0.0
      %1217 = vmatprep.subr.mxu0 0.0
      %1218 = vmatpush2.msra.mxu0 0.0
      %1219 = vmatprep.subr.mxu0 0.0
      %1220 = vmatpush2.msra.mxu0 0.0
      %1221 = vmatprep.subr.mxu0 0.0
      %1222 = vmatpush2.msra.mxu0 0.0
      %1223 = vmatprep.subr.mxu0 0.0
      %1224 = vmatpush2.msra.mxu0 0.0
      %1225 = vmatprep.subr.mxu0 0.0
      %1226 = vmatpush2.msra.mxu0 0.0
      %1227 = vmatprep.subr.mxu0 0.0
      %1228 = vmatpush2.msra.mxu0 0.0
      %1229 = vmatprep.mubr.f32.mxu0 0.0
      %1230 = vmatmul.mubr.f32.gmra.mxu0 %v1163
      %v1231 = vpop.f32.mrf.mxu0
      %v1232 = vadd.f32 0.0, %v1231
      %v1233 = vpop.f32.mrf.mxu0
      %v1234 = vadd.f32 0.0, %v1233
      %1235 = vdwg.mxu0
      %1236 = vmatprep.subr.mxu0 0.0
      %1237 = vmatpush1.msra.mxu0 0.0
      %1238 = vmatprep.subr.mxu0 0.0
      %1239 = vmatpush1.msra.mxu0 0.0
      %1240 = vmatprep.subr.mxu0 0.0
      %1241 = vmatpush1.msra.mxu0 0.0
      %1242 = vmatprep.subr.mxu0 0.0
      %1243 = vmatpush1.msra.mxu0 0.0
      %1244 = vmatprep.subr.mxu0 0.0
      %1245 = vmatpush1.msra.mxu0 0.0
      %1246 = vmatprep.subr.mxu0 0.0
      %1247 = vmatpush1.msra.mxu0 0.0
      %1248 = vmatprep.subr.mxu0 0.0
      %1249 = vmatpush1.msra.mxu0 0.0
      %1250 = vmatprep.subr.mxu0 0.0
      %1251 = vmatpush1.msra.mxu0 0.0
      %1252 = vmatprep.subr.mxu0 0.0
      %1253 = vmatpush1.msra.mxu0 0.0
      %1254 = vmatprep.subr.mxu0 0.0
      %1255 = vmatpush1.msra.mxu0 0.0
      %1256 = vmatprep.subr.mxu0 0.0
      %1257 = vmatpush1.msra.mxu0 0.0
      %1258 = vmatprep.subr.mxu0 0.0
      %1259 = vmatpush1.msra.mxu0 0.0
      %1260 = vmatprep.subr.mxu0 0.0
      %1261 = vmatpush1.msra.mxu0 0.0
      %1262 = vmatprep.subr.mxu0 0.0
      %1263 = vmatpush1.msra.mxu0 0.0
      %1264 = vmatprep.subr.mxu0 0.0
      %1265 = vmatpush1.msra.mxu0 0.0
      %1266 = vmatprep.subr.mxu0 0.0
      %1267 = vmatpush1.msra.mxu0 %v1158
      %1268 = vmatprep.subr.mxu0 0.0
      %1269 = vmatpush2.msra.mxu0 0.0
      %1270 = vmatprep.subr.mxu0 0.0
      %1271 = vmatpush2.msra.mxu0 0.0
      %1272 = vmatprep.subr.mxu0 0.0
      %1273 = vmatpush2.msra.mxu0 0.0
      %1274 = vmatprep.subr.mxu0 0.0
      %1275 = vmatpush2.msra.mxu0 0.0
      %1276 = vmatprep.subr.mxu0 0.0
      %1277 = vmatpush2.msra.mxu0 0.0
      %1278 = vmatprep.subr.mxu0 0.0
      %1279 = vmatpush2.msra.mxu0 0.0
      %1280 = vmatprep.subr.mxu0 0.0
      %1281 = vmatpush2.msra.mxu0 0.0
      %1282 = vmatprep.subr.mxu0 0.0
      %1283 = vmatpush2.msra.mxu0 0.0
      %1284 = vmatprep.subr.mxu0 0.0
      %1285 = vmatpush2.msra.mxu0 0.0
      %1286 = vmatprep.subr.mxu0 0.0
      %1287 = vmatpush2.msra.mxu0 0.0
      %1288 = vmatprep.subr.mxu0 0.0
      %1289 = vmatpush2.msra.mxu0 0.0
      %1290 = vmatprep.subr.mxu0 0.0
      %1291 = vmatpush2.msra.mxu0 0.0
      %1292 = vmatprep.subr.mxu0 0.0
      %1293 = vmatpush2.msra.mxu0 0.0
      %1294 = vmatprep.subr.mxu0 0.0
      %1295 = vmatpush2.msra.mxu0 0.0
      %1296 = vmatprep.subr.mxu0 0.0
      %1297 = vmatpush2.msra.mxu0 0.0
      %1298 = vmatprep.subr.mxu0 0.0
      %1299 = vmatpush2.msra.mxu0 0.0
      %1300 = vmatprep.mubr.f32.mxu0 0.0
      %1301 = vmatmul.mubr.f32.gmra.mxu0 %v1163
      %v1302 = vpop.f32.mrf.mxu0
      %v1303 = vadd.f32 0.0, %v1302
      %v1304 = vpop.f32.mrf.mxu0
      %1305 = vdwg.mxu0
      %v1306 = vadd.f32 %v1142, %v1232
      %v1307 = vadd.f32 %v1143, %v1234
      %v1308 = vadd.f32 %v1144, %v1303
      %s1309 = scalar_lea.vmem %s0, 56
      %v1310 = vld [vmem:[%s1309] sm:$0xff]
      %1311 = vrot.lane.b32.xlu0 %v175, 91
      %v1312 = vpop.permute.xlu0 %1311
      %1313 = vrot.lane.b32.xlu0 %v176, 91
      %v1314 = vpop.permute.xlu0 %1313
      %1315 = vrot.lane.b32.xlu0 %v177, 91
      %v1316 = vpop.permute.xlu0 %1315
      %1317 = vrot.lane.b32.xlu0 %v178, 91
      %v1318 = vpop.permute.xlu0 %1317
      %vm1319 = vcmask 744448
      %v1320 = vsel %vm1319, %v1312, %v1314
      %v1321 = vsel %vm1319, %v1314, %v1316
      %v1322 = vsel %vm1319, %v1316, %v1318
      %v1327 = vsel %vm200, %v1310, 0
      %1329 = vmatprep.subr.mxu0 0.0
      %1330 = vmatpush1.msra.mxu0 0.0
      %1331 = vmatprep.subr.mxu0 0.0
      %1332 = vmatpush1.msra.mxu0 0.0
      %1333 = vmatprep.subr.mxu0 0.0
      %1334 = vmatpush1.msra.mxu0 0.0
      %1335 = vmatprep.subr.mxu0 0.0
      %1336 = vmatpush1.msra.mxu0 0.0
      %1337 = vmatprep.subr.mxu0 0.0
      %1338 = vmatpush1.msra.mxu0 0.0
      %1339 = vmatprep.subr.mxu0 0.0
      %1340 = vmatpush1.msra.mxu0 0.0
      %1341 = vmatprep.subr.mxu0 0.0
      %1342 = vmatpush1.msra.mxu0 0.0
      %1343 = vmatprep.subr.mxu0 0.0
      %1344 = vmatpush1.msra.mxu0 0.0
      %1345 = vmatprep.subr.mxu0 0.0
      %1346 = vmatpush1.msra.mxu0 0.0
      %1347 = vmatprep.subr.mxu0 0.0
      %1348 = vmatpush1.msra.mxu0 0.0
      %1349 = vmatprep.subr.mxu0 0.0
      %1350 = vmatpush1.msra.mxu0 0.0
      %1351 = vmatprep.subr.mxu0 0.0
      %1352 = vmatpush1.msra.mxu0 0.0
      %1353 = vmatprep.subr.mxu0 0.0
      %1354 = vmatpush1.msra.mxu0 0.0
      %1355 = vmatprep.subr.mxu0 0.0
      %1356 = vmatpush1.msra.mxu0 0.0
      %1357 = vmatprep.subr.mxu0 0.0
      %1358 = vmatpush1.msra.mxu0 0.0
      %1359 = vmatprep.subr.mxu0 %v1321
      %1360 = vmatpush1.msra.mxu0 %v1320
      %1361 = vmatprep.subr.mxu0 0.0
      %1362 = vmatpush2.msra.mxu0 0.0
      %1363 = vmatprep.subr.mxu0 0.0
      %1364 = vmatpush2.msra.mxu0 0.0
      %1365 = vmatprep.subr.mxu0 0.0
      %1366 = vmatpush2.msra.mxu0 0.0
      %1367 = vmatprep.subr.mxu0 0.0
      %1368 = vmatpush2.msra.mxu0 0.0
      %1369 = vmatprep.subr.mxu0 0.0
      %1370 = vmatpush2.msra.mxu0 0.0
      %1371 = vmatprep.subr.mxu0 0.0
      %1372 = vmatpush2.msra.mxu0 0.0
      %1373 = vmatprep.subr.mxu0 0.0
      %1374 = vmatpush2.msra.mxu0 0.0
      %1375 = vmatprep.subr.mxu0 0.0
      %1376 = vmatpush2.msra.mxu0 0.0
      %1377 = vmatprep.subr.mxu0 0.0
      %1378 = vmatpush2.msra.mxu0 0.0
      %1379 = vmatprep.subr.mxu0 0.0
      %1380 = vmatpush2.msra.mxu0 0.0
      %1381 = vmatprep.subr.mxu0 0.0
      %1382 = vmatpush2.msra.mxu0 0.0
      %1383 = vmatprep.subr.mxu0 0.0
      %1384 = vmatpush2.msra.mxu0 0.0
      %1385 = vmatprep.subr.mxu0 0.0
      %1386 = vmatpush2.msra.mxu0 0.0
      %1387 = vmatprep.subr.mxu0 0.0
      %1388 = vmatpush2.msra.mxu0 0.0
      %1389 = vmatprep.subr.mxu0 0.0
      %1390 = vmatpush2.msra.mxu0 0.0
      %1391 = vmatprep.subr.mxu0 0.0
      %1392 = vmatpush2.msra.mxu0 0.0
      %1393 = vmatprep.mubr.f32.mxu0 0.0
      %1394 = vmatmul.mubr.f32.gmra.mxu0 %v1327
      %v1395 = vpop.f32.mrf.mxu0
      %v1396 = vadd.f32 0.0, %v1395
      %v1397 = vpop.f32.mrf.mxu0
      %v1398 = vadd.f32 0.0, %v1397
      %1399 = vdwg.mxu0
      %1400 = vmatprep.subr.mxu0 0.0
      %1401 = vmatpush1.msra.mxu0 0.0
      %1402 = vmatprep.subr.mxu0 0.0
      %1403 = vmatpush1.msra.mxu0 0.0
      %1404 = vmatprep.subr.mxu0 0.0
      %1405 = vmatpush1.msra.mxu0 0.0
      %1406 = vmatprep.subr.mxu0 0.0
      %1407 = vmatpush1.msra.mxu0 0.0
      %1408 = vmatprep.subr.mxu0 0.0
      %1409 = vmatpush1.msra.mxu0 0.0
      %1410 = vmatprep.subr.mxu0 0.0
      %1411 = vmatpush1.msra.mxu0 0.0
      %1412 = vmatprep.subr.mxu0 0.0
      %1413 = vmatpush1.msra.mxu0 0.0
      %1414 = vmatprep.subr.mxu0 0.0
      %1415 = vmatpush1.msra.mxu0 0.0
      %1416 = vmatprep.subr.mxu0 0.0
      %1417 = vmatpush1.msra.mxu0 0.0
      %1418 = vmatprep.subr.mxu0 0.0
      %1419 = vmatpush1.msra.mxu0 0.0
      %1420 = vmatprep.subr.mxu0 0.0
      %1421 = vmatpush1.msra.mxu0 0.0
      %1422 = vmatprep.subr.mxu0 0.0
      %1423 = vmatpush1.msra.mxu0 0.0
      %1424 = vmatprep.subr.mxu0 0.0
      %1425 = vmatpush1.msra.mxu0 0.0
      %1426 = vmatprep.subr.mxu0 0.0
      %1427 = vmatpush1.msra.mxu0 0.0
      %1428 = vmatprep.subr.mxu0 0.0
      %1429 = vmatpush1.msra.mxu0 0.0
      %1430 = vmatprep.subr.mxu0 0.0
      %1431 = vmatpush1.msra.mxu0 %v1322
      %1432 = vmatprep.subr.mxu0 0.0
      %1433 = vmatpush2.msra.mxu0 0.0
      %1434 = vmatprep.subr.mxu0 0.0
      %1435 = vmatpush2.msra.mxu0 0.0
      %1436 = vmatprep.subr.mxu0 0.0
      %1437 = vmatpush2.msra.mxu0 0.0
      %1438 = vmatprep.subr.mxu0 0.0
      %1439 = vmatpush2.msra.mxu0 0.0
      %1440 = vmatprep.subr.mxu0 0.0
      %1441 = vmatpush2.msra.mxu0 0.0
      %1442 = vmatprep.subr.mxu0 0.0
      %1443 = vmatpush2.msra.mxu0 0.0
      %1444 = vmatprep.subr.mxu0 0.0
      %1445 = vmatpush2.msra.mxu0 0.0
      %1446 = vmatprep.subr.mxu0 0.0
      %1447 = vmatpush2.msra.mxu0 0.0
      %1448 = vmatprep.subr.mxu0 0.0
      %1449 = vmatpush2.msra.mxu0 0.0
      %1450 = vmatprep.subr.mxu0 0.0
      %1451 = vmatpush2.msra.mxu0 0.0
      %1452 = vmatprep.subr.mxu0 0.0
      %1453 = vmatpush2.msra.mxu0 0.0
      %1454 = vmatprep.subr.mxu0 0.0
      %1455 = vmatpush2.msra.mxu0 0.0
      %1456 = vmatprep.subr.mxu0 0.0
      %1457 = vmatpush2.msra.mxu0 0.0
      %1458 = vmatprep.subr.mxu0 0.0
      %1459 = vmatpush2.msra.mxu0 0.0
      %1460 = vmatprep.subr.mxu0 0.0
      %1461 = vmatpush2.msra.mxu0 0.0
      %1462 = vmatprep.subr.mxu0 0.0
      %1463 = vmatpush2.msra.mxu0 0.0
      %1464 = vmatprep.mubr.f32.mxu0 0.0
      %1465 = vmatmul.mubr.f32.gmra.mxu0 %v1327
      %v1466 = vpop.f32.mrf.mxu0
      %v1467 = vadd.f32 0.0, %v1466
      %v1468 = vpop.f32.mrf.mxu0
      %1469 = vdwg.mxu0
      %v1470 = vadd.f32 %v1306, %v1396
      %v1471 = vadd.f32 %v1307, %v1398
      %v1472 = vadd.f32 %v1308, %v1467
      %s1473 = scalar_lea.vmem %s0, 64
      %v1474 = vld [vmem:[%s1473] sm:$0xff]
      %1475 = vrot.lane.b32.xlu0 %v175, 90
      %v1476 = vpop.permute.xlu0 %1475
      %1477 = vrot.lane.b32.xlu0 %v176, 90
      %v1478 = vpop.permute.xlu0 %1477
      %1479 = vrot.lane.b32.xlu0 %v177, 90
      %v1480 = vpop.permute.xlu0 %1479
      %1481 = vrot.lane.b32.xlu0 %v178, 90
      %v1482 = vpop.permute.xlu0 %1481
      %vm1483 = vcmask 736256
      %v1484 = vsel %vm1483, %v1476, %v1478
      %v1485 = vsel %vm1483, %v1478, %v1480
      %v1486 = vsel %vm1483, %v1480, %v1482
      %v1491 = vsel %vm200, %v1474, 0
      %1493 = vmatprep.subr.mxu0 0.0
      %1494 = vmatpush1.msra.mxu0 0.0
      %1495 = vmatprep.subr.mxu0 0.0
      %1496 = vmatpush1.msra.mxu0 0.0
      %1497 = vmatprep.subr.mxu0 0.0
      %1498 = vmatpush1.msra.mxu0 0.0
      %1499 = vmatprep.subr.mxu0 0.0
      %1500 = vmatpush1.msra.mxu0 0.0
      %1501 = vmatprep.subr.mxu0 0.0
      %1502 = vmatpush1.msra.mxu0 0.0
      %1503 = vmatprep.subr.mxu0 0.0
      %1504 = vmatpush1.msra.mxu0 0.0
      %1505 = vmatprep.subr.mxu0 0.0
      %1506 = vmatpush1.msra.mxu0 0.0
      %1507 = vmatprep.subr.mxu0 0.0
      %1508 = vmatpush1.msra.mxu0 0.0
      %1509 = vmatprep.subr.mxu0 0.0
      %1510 = vmatpush1.msra.mxu0 0.0
      %1511 = vmatprep.subr.mxu0 0.0
      %1512 = vmatpush1.msra.mxu0 0.0
      %1513 = vmatprep.subr.mxu0 0.0
      %1514 = vmatpush1.msra.mxu0 0.0
      %1515 = vmatprep.subr.mxu0 0.0
      %1516 = vmatpush1.msra.mxu0 0.0
      %1517 = vmatprep.subr.mxu0 0.0
      %1518 = vmatpush1.msra.mxu0 0.0
      %1519 = vmatprep.subr.mxu0 0.0
      %1520 = vmatpush1.msra.mxu0 0.0
      %1521 = vmatprep.subr.mxu0 0.0
      %1522 = vmatpush1.msra.mxu0 0.0
      %1523 = vmatprep.subr.mxu0 %v1485
      %1524 = vmatpush1.msra.mxu0 %v1484
      %1525 = vmatprep.subr.mxu0 0.0
      %1526 = vmatpush2.msra.mxu0 0.0
      %1527 = vmatprep.subr.mxu0 0.0
      %1528 = vmatpush2.msra.mxu0 0.0
      %1529 = vmatprep.subr.mxu0 0.0
      %1530 = vmatpush2.msra.mxu0 0.0
      %1531 = vmatprep.subr.mxu0 0.0
      %1532 = vmatpush2.msra.mxu0 0.0
      %1533 = vmatprep.subr.mxu0 0.0
      %1534 = vmatpush2.msra.mxu0 0.0
      %1535 = vmatprep.subr.mxu0 0.0
      %1536 = vmatpush2.msra.mxu0 0.0
      %1537 = vmatprep.subr.mxu0 0.0
      %1538 = vmatpush2.msra.mxu0 0.0
      %1539 = vmatprep.subr.mxu0 0.0
      %1540 = vmatpush2.msra.mxu0 0.0
      %1541 = vmatprep.subr.mxu0 0.0
      %1542 = vmatpush2.msra.mxu0 0.0
      %1543 = vmatprep.subr.mxu0 0.0
      %1544 = vmatpush2.msra.mxu0 0.0
      %1545 = vmatprep.subr.mxu0 0.0
      %1546 = vmatpush2.msra.mxu0 0.0
      %1547 = vmatprep.subr.mxu0 0.0
      %1548 = vmatpush2.msra.mxu0 0.0
      %1549 = vmatprep.subr.mxu0 0.0
      %1550 = vmatpush2.msra.mxu0 0.0
      %1551 = vmatprep.subr.mxu0 0.0
      %1552 = vmatpush2.msra.mxu0 0.0
      %1553 = vmatprep.subr.mxu0 0.0
      %1554 = vmatpush2.msra.mxu0 0.0
      %1555 = vmatprep.subr.mxu0 0.0
      %1556 = vmatpush2.msra.mxu0 0.0
      %1557 = vmatprep.mubr.f32.mxu0 0.0
      %1558 = vmatmul.mubr.f32.gmra.mxu0 %v1491
      %v1559 = vpop.f32.mrf.mxu0
      %v1560 = vadd.f32 0.0, %v1559
      %v1561 = vpop.f32.mrf.mxu0
      %v1562 = vadd.f32 0.0, %v1561
      %1563 = vdwg.mxu0
      %1564 = vmatprep.subr.mxu0 0.0
      %1565 = vmatpush1.msra.mxu0 0.0
      %1566 = vmatprep.subr.mxu0 0.0
      %1567 = vmatpush1.msra.mxu0 0.0
      %1568 = vmatprep.subr.mxu0 0.0
      %1569 = vmatpush1.msra.mxu0 0.0
      %1570 = vmatprep.subr.mxu0 0.0
      %1571 = vmatpush1.msra.mxu0 0.0
      %1572 = vmatprep.subr.mxu0 0.0
      %1573 = vmatpush1.msra.mxu0 0.0
      %1574 = vmatprep.subr.mxu0 0.0
      %1575 = vmatpush1.msra.mxu0 0.0
      %1576 = vmatprep.subr.mxu0 0.0
      %1577 = vmatpush1.msra.mxu0 0.0
      %1578 = vmatprep.subr.mxu0 0.0
      %1579 = vmatpush1.msra.mxu0 0.0
      %1580 = vmatprep.subr.mxu0 0.0
      %1581 = vmatpush1.msra.mxu0 0.0
      %1582 = vmatprep.subr.mxu0 0.0
      %1583 = vmatpush1.msra.mxu0 0.0
      %1584 = vmatprep.subr.mxu0 0.0
      %1585 = vmatpush1.msra.mxu0 0.0
      %1586 = vmatprep.subr.mxu0 0.0
      %1587 = vmatpush1.msra.mxu0 0.0
      %1588 = vmatprep.subr.mxu0 0.0
      %1589 = vmatpush1.msra.mxu0 0.0
      %1590 = vmatprep.subr.mxu0 0.0
      %1591 = vmatpush1.msra.mxu0 0.0
      %1592 = vmatprep.subr.mxu0 0.0
      %1593 = vmatpush1.msra.mxu0 0.0
      %1594 = vmatprep.subr.mxu0 0.0
      %1595 = vmatpush1.msra.mxu0 %v1486
      %1596 = vmatprep.subr.mxu0 0.0
      %1597 = vmatpush2.msra.mxu0 0.0
      %1598 = vmatprep.subr.mxu0 0.0
      %1599 = vmatpush2.msra.mxu0 0.0
      %1600 = vmatprep.subr.mxu0 0.0
      %1601 = vmatpush2.msra.mxu0 0.0
      %1602 = vmatprep.subr.mxu0 0.0
      %1603 = vmatpush2.msra.mxu0 0.0
      %1604 = vmatprep.subr.mxu0 0.0
      %1605 = vmatpush2.msra.mxu0 0.0
      %1606 = vmatprep.subr.mxu0 0.0
      %1607 = vmatpush2.msra.mxu0 0.0
      %1608 = vmatprep.subr.mxu0 0.0
      %1609 = vmatpush2.msra.mxu0 0.0
      %1610 = vmatprep.subr.mxu0 0.0
      %1611 = vmatpush2.msra.mxu0 0.0
      %1612 = vmatprep.subr.mxu0 0.0
      %1613 = vmatpush2.msra.mxu0 0.0
      %1614 = vmatprep.subr.mxu0 0.0
      %1615 = vmatpush2.msra.mxu0 0.0
      %1616 = vmatprep.subr.mxu0 0.0
      %1617 = vmatpush2.msra.mxu0 0.0
      %1618 = vmatprep.subr.mxu0 0.0
      %1619 = vmatpush2.msra.mxu0 0.0
      %1620 = vmatprep.subr.mxu0 0.0
      %1621 = vmatpush2.msra.mxu0 0.0
      %1622 = vmatprep.subr.mxu0 0.0
      %1623 = vmatpush2.msra.mxu0 0.0
      %1624 = vmatprep.subr.mxu0 0.0
      %1625 = vmatpush2.msra.mxu0 0.0
      %1626 = vmatprep.subr.mxu0 0.0
      %1627 = vmatpush2.msra.mxu0 0.0
      %1628 = vmatprep.mubr.f32.mxu0 0.0
      %1629 = vmatmul.mubr.f32.gmra.mxu0 %v1491
      %v1630 = vpop.f32.mrf.mxu0
      %v1631 = vadd.f32 0.0, %v1630
      %v1632 = vpop.f32.mrf.mxu0
      %1633 = vdwg.mxu0
      %v1634 = vadd.f32 %v1470, %v1560
      %v1635 = vadd.f32 %v1471, %v1562
      %v1636 = vadd.f32 %v1472, %v1631
      %v1637 = vld [vmem:[%s1] sm:$0xff]
      %1639 = vset.pattern.permute.xlu0 0
      %1640 = vperm.xlu0 %1639, %v1637
      %v1641 = vpop.permute.xlu0 %1640
      %v1643 = vadd.f32 %v1634, %v1641
      %v1644 = vadd.f32 %v1635, %v1641
      %v1645 = vadd.f32 %v1636, %v1641
      %v1646 = vrot.slane %v1643, 4
      %v1647 = vmax.f32 %v1643, %v1646
      %v1648 = vrot.slane %v1647, 2
      %v1649 = vmax.f32 %v1647, %v1648
      %v1650 = vrot.slane %v1649, 1
      %v1651 = vmax.f32 %v1649, %v1650
      %v1652 = vrot.slane %v1644, 4
      %v1653 = vmax.f32 %v1644, %v1652
      %v1654 = vrot.slane %v1653, 2
      %v1655 = vmax.f32 %v1653, %v1654
      %v1656 = vrot.slane %v1655, 1
      %v1657 = vmax.f32 %v1655, %v1656
      %v1658 = vrot.slane %v1645, 4
      %v1659 = vmax.f32 %v1645, %v1658
      %v1660 = vrot.slane %v1659, 2
      %v1661 = vmax.f32 %v1659, %v1660
      %v1662 = vrot.slane %v1661, 1
      %v1663 = vmax.f32 %v1661, %v1662
      %v1664 = vmax.f32 %v1651, 0.0
      %v1665 = vmax.f32 %v1657, 0.0
      %v1666 = vmax.f32 %v1663, 0.0
      %v1667 = vsub.f32 %v1643, %v1664
      %v1668 = vsub.f32 %v1644, %v1665
      %v1669 = vsub.f32 %v1645, %v1666
      %v1670 = vmul.f32 %v1667, 1.442695
      %v1671 = vpow.pop %v1670
      %v1672 = vmul.f32 %v1668, 1.442695
      %v1673 = vpow.pop %v1672
      %v1674 = vmul.f32 %v1669, 1.442695
      %v1675 = vpow.pop %v1674
      %v1676 = vrot.slane %v1671, 4
      %v1677 = vadd.f32 %v1671, %v1676
      %v1678 = vrot.slane %v1677, 2
      %v1679 = vadd.f32 %v1677, %v1678
      %v1680 = vrot.slane %v1679, 1
      %v1681 = vadd.f32 %v1679, %v1680
      %v1682 = vrot.slane %v1673, 4
      %v1683 = vadd.f32 %v1673, %v1682
      %v1684 = vrot.slane %v1683, 2
      %v1685 = vadd.f32 %v1683, %v1684
      %v1686 = vrot.slane %v1685, 1
      %v1687 = vadd.f32 %v1685, %v1686
      %v1688 = vrot.slane %v1675, 4
      %v1689 = vadd.f32 %v1675, %v1688
      %v1690 = vrot.slane %v1689, 2
      %v1691 = vadd.f32 %v1689, %v1690
      %v1692 = vrot.slane %v1691, 1
      %v1693 = vadd.f32 %v1691, %v1692
      %v1694 = vrcp.pop %v1681
      %v1695 = vrcp.pop %v1687
      %v1696 = vrcp.pop %v1693
      %v1697 = vmul.f32 %v1671, %v1694
      %v1698 = vmul.f32 %v1673, %v1695
      %v1699 = vmul.f32 %v1675, %v1696
      %v1700 = vmul.f32 %v1643, %v1697
      %v1701 = vmul.f32 %v1644, %v1698
      %v1702 = vmul.f32 %v1645, %v1699
      %v1703 = vsub.f32 %v1700, %v1664
      %v1704 = vsub.f32 %v1701, %v1665
      %v1705 = vsub.f32 %v1702, %v1666
      %v1706 = vmul.f32 %v1703, 1.442695
      %v1707 = vpow.pop %v1706
      %v1708 = vmul.f32 %v1704, 1.442695
      %v1709 = vpow.pop %v1708
      %v1710 = vmul.f32 %v1705, 1.442695
      %v1711 = vpow.pop %v1710
      %v1712 = vrot.slane %v1707, 4
      %v1713 = vadd.f32 %v1707, %v1712
      %v1714 = vrot.slane %v1713, 2
      %v1715 = vadd.f32 %v1713, %v1714
      %v1716 = vrot.slane %v1715, 1
      %v1717 = vadd.f32 %v1715, %v1716
      %v1718 = vrot.slane %v1709, 4
      %v1719 = vadd.f32 %v1709, %v1718
      %v1720 = vrot.slane %v1719, 2
      %v1721 = vadd.f32 %v1719, %v1720
      %v1722 = vrot.slane %v1721, 1
      %v1723 = vadd.f32 %v1721, %v1722
      %v1724 = vrot.slane %v1711, 4
      %v1725 = vadd.f32 %v1711, %v1724
      %v1726 = vrot.slane %v1725, 2
      %v1727 = vadd.f32 %v1725, %v1726
      %v1728 = vrot.slane %v1727, 1
      %v1729 = vadd.f32 %v1727, %v1728
      %v1730 = vrcp.pop %v1717
      %v1731 = vrcp.pop %v1723
      %v1732 = vrcp.pop %v1729
      %v1733 = vmul.f32 %v1707, %v1730
      %v1734 = vmul.f32 %v1709, %v1731
      %v1735 = vmul.f32 %v1711, %v1732
      %v1736 = vmul.f32 %v1643, %v1733
      %v1737 = vmul.f32 %v1644, %v1734
      %v1738 = vmul.f32 %v1645, %v1735
      %v1739 = vsub.f32 %v1736, %v1664
      %v1740 = vsub.f32 %v1737, %v1665
      %v1741 = vsub.f32 %v1738, %v1666
      %v1742 = vmul.f32 %v1739, 1.442695
      %v1743 = vpow.pop %v1742
      %v1744 = vmul.f32 %v1740, 1.442695
      %v1745 = vpow.pop %v1744
      %v1746 = vmul.f32 %v1741, 1.442695
      %v1747 = vpow.pop %v1746
      %v1748 = vrot.slane %v1743, 4
      %v1749 = vadd.f32 %v1743, %v1748
      %v1750 = vrot.slane %v1749, 2
      %v1751 = vadd.f32 %v1749, %v1750
      %v1752 = vrot.slane %v1751, 1
      %v1753 = vadd.f32 %v1751, %v1752
      %v1754 = vrot.slane %v1745, 4
      %v1755 = vadd.f32 %v1745, %v1754
      %v1756 = vrot.slane %v1755, 2
      %v1757 = vadd.f32 %v1755, %v1756
      %v1758 = vrot.slane %v1757, 1
      %v1759 = vadd.f32 %v1757, %v1758
      %v1760 = vrot.slane %v1747, 4
      %v1761 = vadd.f32 %v1747, %v1760
      %v1762 = vrot.slane %v1761, 2
      %v1763 = vadd.f32 %v1761, %v1762
      %v1764 = vrot.slane %v1763, 1
      %v1765 = vadd.f32 %v1763, %v1764
      %v1766 = vrcp.pop %v1753
      %v1767 = vrcp.pop %v1759
      %v1768 = vrcp.pop %v1765
      %v1769 = vmul.f32 %v1743, %v1766
      %v1770 = vmul.f32 %v1745, %v1767
      %v1771 = vmul.f32 %v1747, %v1768
      %v1772 = vmul.f32 %v1643, %v1769
      %v1773 = vmul.f32 %v1644, %v1770
      %v1774 = vmul.f32 %v1645, %v1771
      %1775 = vst [vmem:[%s170] sm:$0xff] %v1772
      %1776 = vst [vmem:[%s170 + $0x8] sm:$0xff] %v1773
      %1777 = vst [vmem:[%s170 + $0x10] sm:$0xff] %v1774
      %p1778 = scmp.lt.s32.totalorder %s14, 1
      %s1779 = scalar_select %p1778, %s14, 1
      %s1780 = smul.addr %s1779, 3
      %s1781 = smul.addr %s1780, 8
      %s1782 = scalar_lea.vmem %s3, %s1781
      // Predicated region
      $region33: #{single_bbn_forward.1} parent=31 // pred_check
        %p1783 = pneg %p100
      $region34: #{single_bbn_forward.1} parent=31 // pred_check_branch
        %1785 = sbr.rel (%p1783) target = $region36
      $region35: #{single_bbn_forward.1} parent=31 // pred_region
        _
      $region36: #{single_bbn_forward.1} parent=31 // pred_fallthru
        _
    $region32: #{single_bbn_forward.1} parent=5 // pred_fallthru
      _
    %p1786 = scmp.le.s32.totalorder 2, %s9
    // Predicated region
    $region37: #{single_bbn_forward.1} parent=5 // pred_check
      %p1787 = pneg %p1786
    $region38: #{single_bbn_forward.1} parent=5 // pred_check_branch
      %1789 = sbr.rel (%p1787) target = $region40
    $region39: #{single_bbn_forward.1} parent=5 // pred_region
      %s1790 = ssub.s32 %s9, 2
      // Predicated region
      $region41: #{single_bbn_forward.1} parent=39 // pred_check
        %p1791 = pneg %p106
      $region42: #{single_bbn_forward.1} parent=39 // pred_check_branch
        %1793 = sbr.rel (%p1791) target = $region44
      $region43: #{single_bbn_forward.1} parent=39 // pred_region
        %p1794 = scmp.lt.s32.totalorder %s15, 1
        %s1795 = scalar_select %p1794, %s15, 1
        %s1796 = smul.addr %s1795, 3
        %s1797 = smul.addr %s1796, 8
        %s1798 = scalar_lea.vmem %s3, %s1797
      $region44: #{single_bbn_forward.1} parent=39 // pred_fallthru
        _
    $region40: #{single_bbn_forward.1} parent=5 // pred_fallthru
      _
  $region6: #{single_bbn_forward.1} parent=0 // loop_footer
    %s13 = sadd.s32 1, %s9
  $region7: #{single_bbn_forward.1} parent=0 // loop_footer_branch
    %8 = sbr.rel target = $region3
  $region8: #{single_bbn_forward.1} parent=0 // loop_exit
    _

</llo_original>
